<compile_context>
chip_gen: v7x
topology: tpu7x:2x2x1
jax: 0.10.0
libtpu: 0.0.40
codegen_flags: <defaults>
</compile_context>

<pallas_src>
import jax
import jax.numpy as jnp
from jax.experimental import pallas as pl
from jax.experimental.pallas import tpu as pltpu


def _auto_decoder_kernel(tok_ref,                       # SMEM, (T*B,) int32, scalar-prefetched
                         h0_ref, emb_ref, wih_ref, whh_ref, bih_ref, bhh_ref,
                         wout_ref, bout_ref,            # VMEM-resident inputs
                         logp_ref, hout_ref):           # outputs
    t = pl.program_id(0)
    B, H2 = hout_ref.shape                              # batch, 2*hidden_dim
    O = emb_ref.shape[0]                                # vocab / output_dim

    # Initialize the carried hidden state (the hidden-output block is VMEM-resident across the
    # whole grid, so it doubles as the recurrence scratch).
    @pl.when(t == 0)
    def _():
        hout_ref[...] = h0_ref[...]

    # ---- fused embedding gather (one-hot x table on the MXU) + ReLU ---------------------
    iota_o = jax.lax.broadcasted_iota(jnp.int32, (1, O), 1)
    onehot_rows = [(iota_o == tok_ref[t * B + b]).astype(jnp.float32) for b in range(B)]
    onehot = jnp.concatenate(onehot_rows, axis=0).astype(jnp.bfloat16)          # (B, O)
    x = jnp.dot(onehot, emb_ref[...], preferred_element_type=jnp.float32)       # (B, H)
    x = jnp.maximum(x, 0.0).astype(jnp.bfloat16)         # F.relu(embedding(input)), bf16 for MXU

    # ---- single GRU step (PyTorch gate order r, z, n) ------------------------------------
    h = hout_ref[...]                                    # f32 carry
    gi = jnp.dot(x, wih_ref[...], preferred_element_type=jnp.float32) + bih_ref[...]
    gh = jnp.dot(h.astype(jnp.bfloat16), whh_ref[...],
                 preferred_element_type=jnp.float32) + bhh_ref[...]

    i_r, i_z, i_n = gi[:, 0:H2], gi[:, H2:2 * H2], gi[:, 2 * H2:3 * H2]
    h_r, h_z, h_n = gh[:, 0:H2], gh[:, H2:2 * H2], gh[:, 2 * H2:3 * H2]

    r = jax.nn.sigmoid(i_r + h_r)
    z = jax.nn.sigmoid(i_z + h_z)
    n = jnp.tanh(i_n + r * h_n)
    h_new = (1.0 - z) * n + z * h                        # f32 gate math everywhere

    # ---- output projection + stabilized log-softmax --------------------------------------
    logits = jnp.dot(h_new.astype(jnp.bfloat16), wout_ref[...],
                     preferred_element_type=jnp.float32) + bout_ref[...]
    m = jnp.max(logits, axis=-1, keepdims=True)
    shifted = logits - m
    lse = jnp.log(jnp.sum(jnp.exp(shifted), axis=-1, keepdims=True))

    logp_ref[0] = shifted - lse                          # per-step log-probs
    hout_ref[...] = h_new                                # carry for the next step


def auto_decoder_forward(tokens, hidden, params):
    """Teacher-forced decode.

    tokens: (B,) int32 (single step -> original module semantics) or (B, T) int32.
    hidden: (B, 2H) f32 previous hidden state (== PyTorch hidden.view(1, B, 2H)).
    Returns (log_probs, hidden, kl=None):
      single-step: log_probs (B, O);   multi-step: log_probs (T, B, O)
      hidden: (1, B, 2H) after the last step.
    """
    single_step = tokens.ndim == 1
    if single_step:
        tokens = tokens[:, None]
    B, T = tokens.shape
    H2 = hidden.shape[1]
    O, H = params["embedding"].shape

    tok_flat = jnp.transpose(tokens).reshape(T * B).astype(jnp.int32)   # time-major ids -> SMEM

    # Constant index_map => block is DMA'd once and stays resident in VMEM for all T steps.
    res = lambda shape: pl.BlockSpec(shape, lambda t, tok, _s=len(shape): (0,) * _s)

    grid_spec = pltpu.PrefetchScalarGridSpec(
        num_scalar_prefetch=1,                 # token ids -> SMEM, available to kernel + index_maps
        grid=(T,),
        in_specs=[
            res((B, H2)),                      # h0 (read once, at t == 0)
            res((O, H)),                       # embedding table (bf16, resident)
            res((H, 3 * H2)),                  # W_ih^T (bf16, resident)
            res((H2, 3 * H2)),                 # W_hh^T (bf16, resident)
            res((1, 3 * H2)),                  # b_ih (f32)
            res((1, 3 * H2)),                  # b_hh (f32)
            res((H2, O)),                      # W_out^T (bf16, resident)
            res((1, O)),                       # b_out (f32)
        ],
        out_specs=(
            pl.BlockSpec((1, B, O), lambda t, tok: (t, 0, 0)),   # lane-dense per-step log-probs
            pl.BlockSpec((B, H2), lambda t, tok: (0, 0)),        # resident hidden carry
        ),
    )

    # NOTE: input_output_aliases on the hidden buffer would additionally avoid one (B, 2H) HBM
    # allocation per call; omitted here to keep the call maximally portable.
    logp, h_new = pl.pallas_call(
        _auto_decoder_kernel,
        out_shape=(jax.ShapeDtypeStruct((T, B, O), jnp.float32),
                   jax.ShapeDtypeStruct((B, H2), jnp.float32)),
        grid_spec=grid_spec,
        compiler_params=pltpu.CompilerParams(
            dimension_semantics=("arbitrary",)),   # sequential recurrence over timesteps
    )(tok_flat, hidden, params["embedding"], params["w_ih_t"], params["w_hh_t"],
      params["b_ih"], params["b_hh"], params["w_out_t"], params["b_out"])

    if single_step:
        logp = logp[0]
    return logp, h_new.reshape(1, B, H2), None


def init_params(key, hidden_dim, output_dim):
    # NOTE: keep 2*hidden_dim a multiple of 128 (and output_dim a multiple of 128) so the gate
    # slices / output stores stay lane-aligned; otherwise pad.
    H, O = hidden_dim, output_dim
    H2 = 2 * H
    ks = jax.random.split(key, 7)
    emb = 0.1 * jax.random.normal(ks[0], (O, H), jnp.float32)
    emb = emb.at[0].set(0.0)                                  # padding_idx=0
    return {
        "embedding": emb.astype(jnp.bfloat16),
        "w_ih_t": (0.1 * jax.random.normal(ks[1], (H, 3 * H2), jnp.float32)).astype(jnp.bfloat16),
        "w_hh_t": (0.1 * jax.random.normal(ks[2], (H2, 3 * H2), jnp.float32)).astype(jnp.bfloat16),
        "b_ih": 0.1 * jax.random.normal(ks[3], (1, 3 * H2), jnp.float32),
        "b_hh": 0.1 * jax.random.normal(ks[4], (1, 3 * H2), jnp.float32),
        "w_out_t": (0.1 * jax.random.normal(ks[5], (H2, O), jnp.float32)).astype(jnp.bfloat16),
        "b_out": 0.1 * jax.random.normal(ks[6], (1, O), jnp.float32),
    }


def _reference(tokens, hidden, p):
    """Pure-JAX reference with the same mixed precision (bf16 matmul inputs, f32 gate math)."""
    B, T = tokens.shape
    H2 = hidden.shape[1]
    h = hidden.astype(jnp.float32)
    outs = []
    for t in range(T):
        x = jnp.take(p["embedding"], tokens[:, t], axis=0).astype(jnp.float32)
        x = jnp.maximum(x, 0.0).astype(jnp.bfloat16)
        gi = jnp.dot(x, p["w_ih_t"], preferred_element_type=jnp.float32) + p["b_ih"]
        gh = jnp.dot(h.astype(jnp.bfloat16), p["w_hh_t"],
                     preferred_element_type=jnp.float32) + p["b_hh"]
        r = jax.nn.sigmoid(gi[:, :H2] + gh[:, :H2])
        z = jax.nn.sigmoid(gi[:, H2:2 * H2] + gh[:, H2:2 * H2])
        n = jnp.tanh(gi[:, 2 * H2:] + r * gh[:, 2 * H2:])
        h = (1.0 - z) * n + z * h
        logits = jnp.dot(h.astype(jnp.bfloat16), p["w_out_t"],
                         preferred_element_type=jnp.float32) + p["b_out"]
        outs.append(jax.nn.log_softmax(logits, axis=-1))
    return jnp.stack(outs), h


if __name__ == "__main__":
    B, H, O, T = 8, 64, 256, 6          # batch, AUTOhidden_dim, AUTOoutput_dim, decode steps
    key = jax.random.PRNGKey(0)
    k_tok, k_hid, k_par = jax.random.split(key, 3)

    tokens = jax.random.randint(k_tok, (B, T), 0, O, dtype=jnp.int32)    # teacher-forced ids
    hidden = jax.random.normal(k_hid, (B, 2 * H), jnp.float32)           # prev hidden state
    params = init_params(k_par, H, O)

    # Multi-step path: one pallas_call for all T steps, weights VMEM-resident.
    logp, h_new, kl = auto_decoder_forward(tokens, hidden, params)
    jax.block_until_ready((logp, h_new))

    ref_logp, ref_h = _reference(tokens, hidden, params)
    assert jnp.allclose(logp, ref_logp, atol=1e-3, rtol=1e-3)
    assert jnp.allclose(h_new[0], ref_h, atol=1e-3, rtol=1e-3)
    assert kl is None

    # Single-step path (exact original PyTorch forward semantics: one token per batch row).
    logp1, h1, _ = auto_decoder_forward(tokens[:, 0], hidden, params)
    jax.block_until_ready((logp1, h1))
    assert logp1.shape == (B, O) and h1.shape == (1, B, 2 * H)
    assert jnp.allclose(logp1, ref_logp[0], atol=1e-3, rtol=1e-3)

    print("KERNEL_OK")
</pallas_src>

<mosaic_0001>
module attributes {stable_mosaic.version = 11 : i64} {
  func.func @_auto_decoder_kernel(%arg0: i32, %arg1: memref<48xi32, #tpu.memory_space<smem>>, %arg2: memref<8x128xf32, #tpu.memory_space<vmem>>, %arg3: memref<256x64xbf16, #tpu.memory_space<vmem>>, %arg4: memref<64x384xbf16, #tpu.memory_space<vmem>>, %arg5: memref<128x384xbf16, #tpu.memory_space<vmem>>, %arg6: memref<1x384xf32, #tpu.memory_space<vmem>>, %arg7: memref<1x384xf32, #tpu.memory_space<vmem>>, %arg8: memref<128x256xbf16, #tpu.memory_space<vmem>>, %arg9: memref<1x256xf32, #tpu.memory_space<vmem>>, %arg10: memref<1x8x256xf32, #tpu.memory_space<vmem>>, %arg11: memref<8x128xf32, #tpu.memory_space<vmem>>) attributes {dimension_semantics = [#tpu.dimension_semantics<arbitrary>], iteration_bounds = array<i64: 6>, scalar_prefetch = 1 : i64, scratch_operands = 0 : i64, tpu.core_type = #tpu.core_type<tc>, window_params = [{pipeline_mode = #tpu.pipeline_mode<synchronous>, transform_indices = @transform_0, window_bounds = array<i64: 8, 128>}, {pipeline_mode = #tpu.pipeline_mode<synchronous>, transform_indices = @transform_1, window_bounds = array<i64: 256, 64>}, {pipeline_mode = #tpu.pipeline_mode<synchronous>, transform_indices = @transform_2, window_bounds = array<i64: 64, 384>}, {pipeline_mode = #tpu.pipeline_mode<synchronous>, transform_indices = @transform_3, window_bounds = array<i64: 128, 384>}, {pipeline_mode = #tpu.pipeline_mode<synchronous>, transform_indices = @transform_4, window_bounds = array<i64: 1, 384>}, {pipeline_mode = #tpu.pipeline_mode<synchronous>, transform_indices = @transform_5, window_bounds = array<i64: 1, 384>}, {pipeline_mode = #tpu.pipeline_mode<synchronous>, transform_indices = @transform_6, window_bounds = array<i64: 128, 256>}, {pipeline_mode = #tpu.pipeline_mode<synchronous>, transform_indices = @transform_7, window_bounds = array<i64: 1, 256>}, {transform_indices = @transform_8, window_bounds = array<i64: 1, 8, 256>}, {pipeline_mode = #tpu.pipeline_mode<synchronous>, transform_indices = @transform_9, window_bounds = array<i64: 8, 128>}]} {
    %c0_i32 = arith.constant 0 : i32
    %0 = arith.cmpi eq, %arg0, %c0_i32 : i32
    %1 = arith.extui %0 : i1 to i32
    %c0_i32_0 = arith.constant 0 : i32
    %2 = arith.cmpi ne, %1, %c0_i32_0 : i32
    scf.if %2 {
      %c0_38 = arith.constant 0 : index
      %c0_39 = arith.constant 0 : index
      %133 = vector.load %arg2[%c0_38, %c0_39] : memref<8x128xf32, #tpu.memory_space<vmem>>, vector<8x128xf32>
      %c0_40 = arith.constant 0 : index
      %c0_41 = arith.constant 0 : index
      %134 = vector.load %arg11[%c0_40, %c0_41] : memref<8x128xf32, #tpu.memory_space<vmem>>, vector<8x128xf32>
      tpu.vector_store %arg11[%c0_40, %c0_41], %133 {strides = array<i32>} : memref<8x128xf32, #tpu.memory_space<vmem>>, vector<8x128xf32>,
    } else {
    }
    %3 = tpu.iota {dimensions = array<i32: 1>} : vector<1x256xi32>
    %c8_i32 = arith.constant 8 : i32
    %4 = arith.muli %arg0, %c8_i32 : i32
    %c0_i32_1 = arith.constant 0 : i32
    %5 = arith.addi %4, %c0_i32_1 : i32
    %6 = arith.index_cast %5 : i32 to index
    %7 = memref.load %arg1[%6] : memref<48xi32, #tpu.memory_space<smem>>
    %8 = vector.broadcast %7 : i32 to vector<1x256xi32>
    %9 = arith.cmpi eq, %3, %8 : vector<1x256xi32>
    %10 = arith.extui %9 : vector<1x256xi1> to vector<1x256xi32>
    %11 = arith.sitofp %10 : vector<1x256xi32> to vector<1x256xf32>
    %c8_i32_2 = arith.constant 8 : i32
    %12 = arith.muli %arg0, %c8_i32_2 : i32
    %c1_i32 = arith.constant 1 : i32
    %13 = arith.addi %12, %c1_i32 : i32
    %14 = arith.index_cast %13 : i32 to index
    %15 = memref.load %arg1[%14] : memref<48xi32, #tpu.memory_space<smem>>
    %16 = vector.broadcast %15 : i32 to vector<1x256xi32>
    %17 = arith.cmpi eq, %3, %16 : vector<1x256xi32>
    %18 = arith.extui %17 : vector<1x256xi1> to vector<1x256xi32>
    %19 = arith.sitofp %18 : vector<1x256xi32> to vector<1x256xf32>
    %c8_i32_3 = arith.constant 8 : i32
    %20 = arith.muli %arg0, %c8_i32_3 : i32
    %c2_i32 = arith.constant 2 : i32
    %21 = arith.addi %20, %c2_i32 : i32
    %22 = arith.index_cast %21 : i32 to index
    %23 = memref.load %arg1[%22] : memref<48xi32, #tpu.memory_space<smem>>
    %24 = vector.broadcast %23 : i32 to vector<1x256xi32>
    %25 = arith.cmpi eq, %3, %24 : vector<1x256xi32>
    %26 = arith.extui %25 : vector<1x256xi1> to vector<1x256xi32>
    %27 = arith.sitofp %26 : vector<1x256xi32> to vector<1x256xf32>
    %c8_i32_4 = arith.constant 8 : i32
    %28 = arith.muli %arg0, %c8_i32_4 : i32
    %c3_i32 = arith.constant 3 : i32
    %29 = arith.addi %28, %c3_i32 : i32
    %30 = arith.index_cast %29 : i32 to index
    %31 = memref.load %arg1[%30] : memref<48xi32, #tpu.memory_space<smem>>
    %32 = vector.broadcast %31 : i32 to vector<1x256xi32>
    %33 = arith.cmpi eq, %3, %32 : vector<1x256xi32>
    %34 = arith.extui %33 : vector<1x256xi1> to vector<1x256xi32>
    %35 = arith.sitofp %34 : vector<1x256xi32> to vector<1x256xf32>
    %c8_i32_5 = arith.constant 8 : i32
    %36 = arith.muli %arg0, %c8_i32_5 : i32
    %c4_i32 = arith.constant 4 : i32
    %37 = arith.addi %36, %c4_i32 : i32
    %38 = arith.index_cast %37 : i32 to index
    %39 = memref.load %arg1[%38] : memref<48xi32, #tpu.memory_space<smem>>
    %40 = vector.broadcast %39 : i32 to vector<1x256xi32>
    %41 = arith.cmpi eq, %3, %40 : vector<1x256xi32>
    %42 = arith.extui %41 : vector<1x256xi1> to vector<1x256xi32>
    %43 = arith.sitofp %42 : vector<1x256xi32> to vector<1x256xf32>
    %c8_i32_6 = arith.constant 8 : i32
    %44 = arith.muli %arg0, %c8_i32_6 : i32
    %c5_i32 = arith.constant 5 : i32
    %45 = arith.addi %44, %c5_i32 : i32
    %46 = arith.index_cast %45 : i32 to index
    %47 = memref.load %arg1[%46] : memref<48xi32, #tpu.memory_space<smem>>
    %48 = vector.broadcast %47 : i32 to vector<1x256xi32>
    %49 = arith.cmpi eq, %3, %48 : vector<1x256xi32>
    %50 = arith.extui %49 : vector<1x256xi1> to vector<1x256xi32>
    %51 = arith.sitofp %50 : vector<1x256xi32> to vector<1x256xf32>
    %c8_i32_7 = arith.constant 8 : i32
    %52 = arith.muli %arg0, %c8_i32_7 : i32
    %c6_i32 = arith.constant 6 : i32
    %53 = arith.addi %52, %c6_i32 : i32
    %54 = arith.index_cast %53 : i32 to index
    %55 = memref.load %arg1[%54] : memref<48xi32, #tpu.memory_space<smem>>
    %56 = vector.broadcast %55 : i32 to vector<1x256xi32>
    %57 = arith.cmpi eq, %3, %56 : vector<1x256xi32>
    %58 = arith.extui %57 : vector<1x256xi1> to vector<1x256xi32>
    %59 = arith.sitofp %58 : vector<1x256xi32> to vector<1x256xf32>
    %c8_i32_8 = arith.constant 8 : i32
    %60 = arith.muli %arg0, %c8_i32_8 : i32
    %c7_i32 = arith.constant 7 : i32
    %61 = arith.addi %60, %c7_i32 : i32
    %62 = arith.index_cast %61 : i32 to index
    %63 = memref.load %arg1[%62] : memref<48xi32, #tpu.memory_space<smem>>
    %64 = vector.broadcast %63 : i32 to vector<1x256xi32>
    %65 = arith.cmpi eq, %3, %64 : vector<1x256xi32>
    %66 = arith.extui %65 : vector<1x256xi1> to vector<1x256xi32>
    %67 = arith.sitofp %66 : vector<1x256xi32> to vector<1x256xf32>
    %68 = tpu.concatenate %11, %19, %27, %35, %43, %51, %59, %67 in 0 : vector<1x256xf32>, vector<1x256xf32>, vector<1x256xf32>, vector<1x256xf32>, vector<1x256xf32>, vector<1x256xf32>, vector<1x256xf32>, vector<1x256xf32> -> vector<8x256xf32>
    %69 = arith.truncf %68 : vector<8x256xf32> to vector<8x256xbf16>
    %c0 = arith.constant 0 : index
    %c0_9 = arith.constant 0 : index
    %70 = vector.load %arg3[%c0, %c0_9] : memref<256x64xbf16, #tpu.memory_space<vmem>>, vector<256x64xbf16>
    %cst = arith.constant dense<0.000000e+00> : vector<8x64xf32>
    %71 = tpu.matmul %69, %70, %cst {dimension_numbers = #tpu.dot_dimension_numbers<[1], [0], [0], [1], [0, 0, 1, 1], [], []>} : vector<8x256xbf16>, vector<256x64xbf16>, vector<8x64xf32> -> vector<8x64xf32>
    %cst_10 = arith.constant 0.000000e+00 : f32
    %72 = vector.broadcast %cst_10 : f32 to vector<8x64xf32>
    %73 = arith.maximumf %71, %72 : vector<8x64xf32>
    %74 = arith.truncf %73 : vector<8x64xf32> to vector<8x64xbf16>
    %c0_11 = arith.constant 0 : index
    %c0_12 = arith.constant 0 : index
    %75 = vector.load %arg11[%c0_11, %c0_12] : memref<8x128xf32, #tpu.memory_space<vmem>>, vector<8x128xf32>
    %c0_13 = arith.constant 0 : index
    %c0_14 = arith.constant 0 : index
    %76 = vector.load %arg4[%c0_13, %c0_14] : memref<64x384xbf16, #tpu.memory_space<vmem>>, vector<64x384xbf16>
    %cst_15 = arith.constant dense<0.000000e+00> : vector<8x384xf32>
    %77 = tpu.matmul %74, %76, %cst_15 {dimension_numbers = #tpu.dot_dimension_numbers<[1], [0], [0], [1], [0, 0, 1, 1], [], []>} : vector<8x64xbf16>, vector<64x384xbf16>, vector<8x384xf32> -> vector<8x384xf32>
    %c0_16 = arith.constant 0 : index
    %c0_17 = arith.constant 0 : index
    %78 = vector.load %arg6[%c0_16, %c0_17] : memref<1x384xf32, #tpu.memory_space<vmem>>, vector<1x384xf32>
    %79 = vector.broadcast %78 : vector<1x384xf32> to vector<8x384xf32>
    %80 = arith.addf %77, %79 : vector<8x384xf32>
    %81 = arith.truncf %75 : vector<8x128xf32> to vector<8x128xbf16>
    %c0_18 = arith.constant 0 : index
    %c0_19 = arith.constant 0 : index
    %82 = vector.load %arg5[%c0_18, %c0_19] : memref<128x384xbf16, #tpu.memory_space<vmem>>, vector<128x384xbf16>
    %cst_20 = arith.constant dense<0.000000e+00> : vector<8x384xf32>
    %83 = tpu.matmul %81, %82, %cst_20 {dimension_numbers = #tpu.dot_dimension_numbers<[1], [0], [0], [1], [0, 0, 1, 1], [], []>} : vector<8x128xbf16>, vector<128x384xbf16>, vector<8x384xf32> -> vector<8x384xf32>
    %c0_21 = arith.constant 0 : index
    %c0_22 = arith.constant 0 : index
    %84 = vector.load %arg7[%c0_21, %c0_22] : memref<1x384xf32, #tpu.memory_space<vmem>>, vector<1x384xf32>
    %85 = vector.broadcast %84 : vector<1x384xf32> to vector<8x384xf32>
    %86 = arith.addf %83, %85 : vector<8x384xf32>
    %87 = vector.extract_strided_slice %80 {offsets = [0, 0], sizes = [8, 128], strides = [1, 1]} : vector<8x384xf32> to vector<8x128xf32>
    %88 = vector.extract_strided_slice %80 {offsets = [0, 128], sizes = [8, 128], strides = [1, 1]} : vector<8x384xf32> to vector<8x128xf32>
    %89 = vector.extract_strided_slice %80 {offsets = [0, 256], sizes = [8, 128], strides = [1, 1]} : vector<8x384xf32> to vector<8x128xf32>
    %90 = vector.extract_strided_slice %86 {offsets = [0, 0], sizes = [8, 128], strides = [1, 1]} : vector<8x384xf32> to vector<8x128xf32>
    %91 = vector.extract_strided_slice %86 {offsets = [0, 128], sizes = [8, 128], strides = [1, 1]} : vector<8x384xf32> to vector<8x128xf32>
    %92 = vector.extract_strided_slice %86 {offsets = [0, 256], sizes = [8, 128], strides = [1, 1]} : vector<8x384xf32> to vector<8x128xf32>
    %93 = arith.addf %87, %90 : vector<8x128xf32>
    %94 = arith.negf %93 : vector<8x128xf32>
    %95 = math.exp %94 : vector<8x128xf32>
    %cst_23 = arith.constant 1.000000e+00 : f32
    %96 = vector.broadcast %cst_23 : f32 to vector<8x128xf32>
    %97 = arith.addf %96, %95 : vector<8x128xf32>
    %98 = arith.divf %96, %97 : vector<8x128xf32>
    %99 = arith.addf %88, %91 : vector<8x128xf32>
    %100 = arith.negf %99 : vector<8x128xf32>
    %101 = math.exp %100 : vector<8x128xf32>
    %cst_24 = arith.constant 1.000000e+00 : f32
    %102 = vector.broadcast %cst_24 : f32 to vector<8x128xf32>
    %103 = arith.addf %102, %101 : vector<8x128xf32>
    %104 = arith.divf %102, %103 : vector<8x128xf32>
    %105 = arith.mulf %98, %92 : vector<8x128xf32>
    %106 = arith.addf %89, %105 : vector<8x128xf32>
    %107 = math.tanh %106 : vector<8x128xf32>
    %cst_25 = arith.constant 1.000000e+00 : f32
    %108 = vector.broadcast %cst_25 : f32 to vector<8x128xf32>
    %109 = arith.subf %108, %104 : vector<8x128xf32>
    %110 = arith.mulf %109, %107 : vector<8x128xf32>
    %111 = arith.mulf %104, %75 : vector<8x128xf32>
    %112 = arith.addf %110, %111 : vector<8x128xf32>
    %113 = arith.truncf %112 : vector<8x128xf32> to vector<8x128xbf16>
    %c0_26 = arith.constant 0 : index
    %c0_27 = arith.constant 0 : index
    %114 = vector.load %arg8[%c0_26, %c0_27] : memref<128x256xbf16, #tpu.memory_space<vmem>>, vector<128x256xbf16>
    %cst_28 = arith.constant dense<0.000000e+00> : vector<8x256xf32>
    %115 = tpu.matmul %113, %114, %cst_28 {dimension_numbers = #tpu.dot_dimension_numbers<[1], [0], [0], [1], [0, 0, 1, 1], [], []>} : vector<8x128xbf16>, vector<128x256xbf16>, vector<8x256xf32> -> vector<8x256xf32>
    %c0_29 = arith.constant 0 : index
    %c0_30 = arith.constant 0 : index
    %116 = vector.load %arg9[%c0_29, %c0_30] : memref<1x256xf32, #tpu.memory_space<vmem>>, vector<1x256xf32>
    %117 = vector.broadcast %116 : vector<1x256xf32> to vector<8x256xf32>
    %118 = arith.addf %115, %117 : vector<8x256xf32>
    %cst_31 = arith.constant dense<0xFF800000> : vector<8xf32>
    %119 = vector.multi_reduction <maximumf>, %118, %cst_31 [1] : vector<8x256xf32> to vector<8xf32>
    %120 = vector.shape_cast %119 : vector<8xf32> to vector<8x1xf32>
    %121 = vector.broadcast %120 : vector<8x1xf32> to vector<8x256xf32>
    %122 = arith.subf %118, %121 : vector<8x256xf32>
    %123 = math.exp %122 : vector<8x256xf32>
    %cst_32 = arith.constant dense<0.000000e+00> : vector<8xf32>
    %124 = vector.multi_reduction <add>, %123, %cst_32 [1] : vector<8x256xf32> to vector<8xf32>
    %125 = vector.shape_cast %124 : vector<8xf32> to vector<8x1xf32>
    %126 = math.log %125 : vector<8x1xf32>
    %127 = vector.broadcast %126 : vector<8x1xf32> to vector<8x256xf32>
    %128 = arith.subf %122, %127 : vector<8x256xf32>
    %c0_33 = arith.constant 0 : index
    %c0_34 = arith.constant 0 : index
    %c0_35 = arith.constant 0 : index
    %129 = vector.load %arg10[%c0_33, %c0_34, %c0_35] : memref<1x8x256xf32, #tpu.memory_space<vmem>>, vector<1x8x256xf32>
    %130 = vector.shape_cast %129 : vector<1x8x256xf32> to vector<8x256xf32>
    %131 = vector.shape_cast %128 : vector<8x256xf32> to vector<1x8x256xf32>
    tpu.vector_store %arg10[%c0_33, %c0_34, %c0_35], %131 {strides = array<i32>} : memref<1x8x256xf32, #tpu.memory_space<vmem>>, vector<1x8x256xf32>,
    %c0_36 = arith.constant 0 : index
    %c0_37 = arith.constant 0 : index
    %132 = vector.load %arg11[%c0_36, %c0_37] : memref<8x128xf32, #tpu.memory_space<vmem>>, vector<8x128xf32>
    tpu.vector_store %arg11[%c0_36, %c0_37], %112 {strides = array<i32>} : memref<8x128xf32, #tpu.memory_space<vmem>>, vector<8x128xf32>,
    return
  }
  func.func @transform_0(%arg0: i32, %arg1: memref<48xi32, #tpu.memory_space<smem>>) -> (i32, i32) {
    %c0_i32 = arith.constant 0 : i32
    %c0_i32_0 = arith.constant 0 : i32
    %c0_i32_1 = arith.constant 0 : i32
    return %c0_i32, %c0_i32_0 : i32, i32
  }
  func.func @transform_1(%arg0: i32, %arg1: memref<48xi32, #tpu.memory_space<smem>>) -> (i32, i32) {
    %c0_i32 = arith.constant 0 : i32
    %c0_i32_0 = arith.constant 0 : i32
    %c0_i32_1 = arith.constant 0 : i32
    return %c0_i32, %c0_i32_0 : i32, i32
  }
  func.func @transform_2(%arg0: i32, %arg1: memref<48xi32, #tpu.memory_space<smem>>) -> (i32, i32) {
    %c0_i32 = arith.constant 0 : i32
    %c0_i32_0 = arith.constant 0 : i32
    %c0_i32_1 = arith.constant 0 : i32
    return %c0_i32, %c0_i32_0 : i32, i32
  }
  func.func @transform_3(%arg0: i32, %arg1: memref<48xi32, #tpu.memory_space<smem>>) -> (i32, i32) {
    %c0_i32 = arith.constant 0 : i32
    %c0_i32_0 = arith.constant 0 : i32
    %c0_i32_1 = arith.constant 0 : i32
    return %c0_i32, %c0_i32_0 : i32, i32
  }
  func.func @transform_4(%arg0: i32, %arg1: memref<48xi32, #tpu.memory_space<smem>>) -> (i32, i32) {
    %c0_i32 = arith.constant 0 : i32
    %c0_i32_0 = arith.constant 0 : i32
    %c0_i32_1 = arith.constant 0 : i32
    return %c0_i32, %c0_i32_0 : i32, i32
  }
  func.func @transform_5(%arg0: i32, %arg1: memref<48xi32, #tpu.memory_space<smem>>) -> (i32, i32) {
    %c0_i32 = arith.constant 0 : i32
    %c0_i32_0 = arith.constant 0 : i32
    %c0_i32_1 = arith.constant 0 : i32
    return %c0_i32, %c0_i32_0 : i32, i32
  }
  func.func @transform_6(%arg0: i32, %arg1: memref<48xi32, #tpu.memory_space<smem>>) -> (i32, i32) {
    %c0_i32 = arith.constant 0 : i32
    %c0_i32_0 = arith.constant 0 : i32
    %c0_i32_1 = arith.constant 0 : i32
    return %c0_i32, %c0_i32_0 : i32, i32
  }
  func.func @transform_7(%arg0: i32, %arg1: memref<48xi32, #tpu.memory_space<smem>>) -> (i32, i32) {
    %c0_i32 = arith.constant 0 : i32
    %c0_i32_0 = arith.constant 0 : i32
    %c0_i32_1 = arith.constant 0 : i32
    return %c0_i32, %c0_i32_0 : i32, i32
  }
  func.func @transform_8(%arg0: i32, %arg1: memref<48xi32, #tpu.memory_space<smem>>) -> (i32, i32, i32) {
    %c0_i32 = arith.constant 0 : i32
    %c0_i32_0 = arith.constant 0 : i32
    %c0_i32_1 = arith.constant 0 : i32
    return %arg0, %c0_i32, %c0_i32_0 : i32, i32, i32
  }
  func.func @transform_9(%arg0: i32, %arg1: memref<48xi32, #tpu.memory_space<smem>>) -> (i32, i32) {
    %c0_i32 = arith.constant 0 : i32
    %c0_i32_0 = arith.constant 0 : i32
    %c0_i32_1 = arith.constant 0 : i32
    return %c0_i32, %c0_i32_0 : i32, i32
  }
}

</mosaic_0001>

<llo_original>
// kernel: tpu_custom_call.1
$region0: #{tpu_custom_call.1}
  #allocation0 [shape = 'u32[]', space=smem, size = 0x4, offset = 0x4, fixed_abs, tag = 'smem constant byte address 0x4 - core index']
  #allocation1 [shape = 'u32[144,128]{1,0:T(1,128)}', space=vmem, size = 0x12000, scoped, tag = 'internal scratch']
  #allocation2 [shape = 's32[1]{0}', space=sflag, size = 0x4, scoped, tag = 'scoped memory for tpu_custom_call.1']
  #allocation3 [shape = 'u8[512]{0}', space=smem, size = 0x200, scoped, tag = 'prefetched SMEM operand 0']
  %s0 = inlined_call_operand.vmem [shape: s32[48], index: 0, kind: input, shape index: {}]
  %s1 = inlined_call_operand.vmem [shape: f32[8,128], index: 1, kind: input, shape index: {}]
  %s2 = inlined_call_operand.vmem [shape: bf16[256,64], index: 2, kind: input, shape index: {}]
  %s3 = inlined_call_operand.hbm [shape: bf16[64,384], index: 3, kind: input, shape index: {}]
  %s4 = inlined_call_operand.vmem [shape: bf16[128,384], index: 4, kind: input, shape index: {}]
  %s5 = inlined_call_operand.vmem [shape: f32[1,384], index: 5, kind: input, shape index: {}]
  %s6 = inlined_call_operand.vmem [shape: f32[1,384], index: 6, kind: input, shape index: {}]
  %s7 = inlined_call_operand.hbm [shape: bf16[128,256], index: 7, kind: input, shape index: {}]
  %s8 = inlined_call_operand.vmem [shape: f32[1,256], index: 8, kind: input, shape index: {}]
  %s9 = inlined_call_operand.hbm [shape: f32[6,8,256], index: 9, kind: output, shape index: {0}]
  %s10 = inlined_call_operand.hbm [shape: f32[8,128], index: 10, kind: output, shape index: {1}]
  %11 = xla_tuple %s9, %s10
  %s12 = sld [smem:[#allocation0]]
  $region85: #{tpu_custom_call.1} parent=0
    _
  %s14 = ssub.s32 1, %s12
  %s15 = scalar_select 0, %s14, %s12
  %s16 = sshll.u32 %s0, 4
  %s17 = int_to_ptr.vmem [resolvable:$true] %s16
  %19 = dma.vmem_to_smem %s17, 16, [#allocation3], [#allocation2]
  %20 = dma.done [#allocation2], 16
  %21 = sfence
  $region1: #{tpu_custom_call.1} parent=0
    #allocation4 [shape = 'u8[49152]{0}', space=vmem, size = 0xc000, scoped, tag = 'input window, operand 3, single buffered']
    #allocation5 [shape = 's32[2]{0}', space=sflag, size = 0x8, scoped, tag = 'scoped memory for tpu_custom_call.1']
    #allocation6 [shape = 's32[2]{0}', space=sflag, size = 0x8, scoped, tag = 'scoped memory for tpu_custom_call.1']
    #allocation7 [shape = 'u8[65536]{0}', space=vmem, size = 0x10000, scoped, tag = 'input window, operand 7, single buffered']
    #allocation8 [shape = 's32[1]{0}', space=sflag, size = 0x4, scoped, tag = 'scoped memory for tpu_custom_call.1']
    #allocation9 [shape = 'u8[16384]{0}', space=vmem, size = 0x4000, scoped, tag = 'output window, operand 0']
    #allocation10 [shape = 'u8[4096]{0}', space=vmem, size = 0x1000, scoped, tag = 'output window, operand 1, single buffered']
    #allocation11 [shape = 's32[1]{0}', space=sflag, size = 0x4, scoped, tag = 'scoped memory for tpu_custom_call.1']
    %22 = vsyncpa [#allocation5], 0
    %23 = vsyncpa [#allocation8], 0
    %24 = vsyncpa [#allocation6], 0
    %s25 = scalar_lea.sflag [#allocation6], 1
    %26 = vsyncpa %s25, 0
    %27 = vsyncpa [#allocation11], 0
    loop: start=0, step=1, limit=8
    $region2: #{tpu_custom_call.1} parent=1 // loop_pre_header
      _
    $region3: #{tpu_custom_call.1} parent=1 // loop_header
      %s29 = sphi 0, %s33
      %p30 = scmp.ge.s32.totalorder %s29, 8
      %s37 = sphi 0, %s37
      %s39 = sphi 0, %s37
      %s40 = sphi 0, %s39
      %s54 = sphi 0, %s40
      %s58 = sphi 0, %s58
      %s60 = sphi 0, %s58
      %s61 = sphi 0, %s60
      %s75 = sphi 0, %s61
      %s79 = sphi 0, %s79
      %s81 = sphi 0, %s79
      %s82 = sphi 0, %s81
      %s96 = sphi 0, %s82
      %s100 = sphi 0, %s100
      %s102 = sphi 0, %s100
      %s103 = sphi 0, %s102
      %s117 = sphi 0, %s103
      %s121 = sphi 0, %s121
      %s123 = sphi 0, %s121
      %s124 = sphi 0, %s123
      %s138 = sphi 0, %s124
      %s142 = sphi 0, %s142
      %s144 = sphi 0, %s142
      %s145 = sphi 0, %s144
      %s159 = sphi 0, %s145
      %s163 = sphi 0, %s163
      %s165 = sphi 0, %s163
      %s166 = sphi 0, %s165
      %s180 = sphi 0, %s166
      %s184 = sphi 0, %s184
      %s186 = sphi 0, %s184
      %s187 = sphi 0, %s186
      %s201 = sphi 0, %s187
      %s207 = sphi 0, %s209
      %s210 = sphi 0, %s207
      %s211 = sphi 0, %s210
      %s227 = sphi 0, %s211
      %s231 = sphi 0, %s231
      %s233 = sphi 0, %s231
      %s234 = sphi 0, %s233
      %s248 = sphi 0, %s234
    $region4: #{tpu_custom_call.1} parent=1 // loop_header_branch
      %32 = sbr.rel (%p30) target = $region8
    $region5: #{tpu_custom_call.1} parent=1 // loop_body
      %s34 = ssub.s32 %s29, 1
      %s35 = ssub.s32 %s29, 2
      %s36 = sadd.s32 %s29, 1
      %s38 = sadd.s32 %s37, 1
      %p41 = scmp.eq.s32.totalorder %s29, 5
      %p42 = scmp.ne.s32.totalorder %s37, %s39
      %p43 = scmp.eq.s32.totalorder %s29, 0
      %p44 = por %p42, %p43
      %p45 = scmp.ne.s32.totalorder %s37, %s39
      %p46 = scmp.eq.s32.totalorder %s34, 5
      %p47 = por %p45, %p46
      %p48 = scmp.ne.s32.totalorder %s39, %s40
      %p49 = scmp.eq.s32.totalorder %s34, 0
      %p50 = por %p48, %p49
      %p51 = scmp.ne.s32.totalorder %s39, %s40
      %p52 = scmp.eq.s32.totalorder %s35, 5
      %p53 = por %p51, %p52
      %p55 = scmp.ne.s32.totalorder %s40, %s54
      %p56 = scmp.eq.s32.totalorder %s35, 0
      %p57 = por %p55, %p56
      %s59 = sadd.s32 %s58, 1
      %p62 = scmp.eq.s32.totalorder %s29, 5
      %p63 = scmp.ne.s32.totalorder %s58, %s60
      %p64 = scmp.eq.s32.totalorder %s29, 0
      %p65 = por %p63, %p64
      %p66 = scmp.ne.s32.totalorder %s58, %s60
      %p67 = scmp.eq.s32.totalorder %s34, 5
      %p68 = por %p66, %p67
      %p69 = scmp.ne.s32.totalorder %s60, %s61
      %p70 = scmp.eq.s32.totalorder %s34, 0
      %p71 = por %p69, %p70
      %p72 = scmp.ne.s32.totalorder %s60, %s61
      %p73 = scmp.eq.s32.totalorder %s35, 5
      %p74 = por %p72, %p73
      %p76 = scmp.ne.s32.totalorder %s61, %s75
      %p77 = scmp.eq.s32.totalorder %s35, 0
      %p78 = por %p76, %p77
      %s80 = sadd.s32 %s79, 1
      %p83 = scmp.eq.s32.totalorder %s29, 5
      %p84 = scmp.ne.s32.totalorder %s79, %s81
      %p85 = scmp.eq.s32.totalorder %s29, 0
      %p86 = por %p84, %p85
      %p87 = scmp.ne.s32.totalorder %s79, %s81
      %p88 = scmp.eq.s32.totalorder %s34, 5
      %p89 = por %p87, %p88
      %p90 = scmp.ne.s32.totalorder %s81, %s82
      %p91 = scmp.eq.s32.totalorder %s34, 0
      %p92 = por %p90, %p91
      %p93 = scmp.ne.s32.totalorder %s81, %s82
      %p94 = scmp.eq.s32.totalorder %s35, 5
      %p95 = por %p93, %p94
      %p97 = scmp.ne.s32.totalorder %s82, %s96
      %p98 = scmp.eq.s32.totalorder %s35, 0
      %p99 = por %p97, %p98
      %s101 = sadd.s32 %s100, 1
      %p104 = scmp.eq.s32.totalorder %s29, 5
      %p105 = scmp.ne.s32.totalorder %s100, %s102
      %p106 = scmp.eq.s32.totalorder %s29, 0
      %p107 = por %p105, %p106
      %p108 = scmp.ne.s32.totalorder %s100, %s102
      %p109 = scmp.eq.s32.totalorder %s34, 5
      %p110 = por %p108, %p109
      %p111 = scmp.ne.s32.totalorder %s102, %s103
      %p112 = scmp.eq.s32.totalorder %s34, 0
      %p113 = por %p111, %p112
      %p114 = scmp.ne.s32.totalorder %s102, %s103
      %p115 = scmp.eq.s32.totalorder %s35, 5
      %p116 = por %p114, %p115
      %p118 = scmp.ne.s32.totalorder %s103, %s117
      %p119 = scmp.eq.s32.totalorder %s35, 0
      %p120 = por %p118, %p119
      %s122 = sadd.s32 %s121, 1
      %p125 = scmp.eq.s32.totalorder %s29, 5
      %p126 = scmp.ne.s32.totalorder %s121, %s123
      %p127 = scmp.eq.s32.totalorder %s29, 0
      %p128 = por %p126, %p127
      %p129 = scmp.ne.s32.totalorder %s121, %s123
      %p130 = scmp.eq.s32.totalorder %s34, 5
      %p131 = por %p129, %p130
      %p132 = scmp.ne.s32.totalorder %s123, %s124
      %p133 = scmp.eq.s32.totalorder %s34, 0
      %p134 = por %p132, %p133
      %p135 = scmp.ne.s32.totalorder %s123, %s124
      %p136 = scmp.eq.s32.totalorder %s35, 5
      %p137 = por %p135, %p136
      %p139 = scmp.ne.s32.totalorder %s124, %s138
      %p140 = scmp.eq.s32.totalorder %s35, 0
      %p141 = por %p139, %p140
      %s143 = sadd.s32 %s142, 1
      %p146 = scmp.eq.s32.totalorder %s29, 5
      %p147 = scmp.ne.s32.totalorder %s142, %s144
      %p148 = scmp.eq.s32.totalorder %s29, 0
      %p149 = por %p147, %p148
      %p150 = scmp.ne.s32.totalorder %s142, %s144
      %p151 = scmp.eq.s32.totalorder %s34, 5
      %p152 = por %p150, %p151
      %p153 = scmp.ne.s32.totalorder %s144, %s145
      %p154 = scmp.eq.s32.totalorder %s34, 0
      %p155 = por %p153, %p154
      %p156 = scmp.ne.s32.totalorder %s144, %s145
      %p157 = scmp.eq.s32.totalorder %s35, 5
      %p158 = por %p156, %p157
      %p160 = scmp.ne.s32.totalorder %s145, %s159
      %p161 = scmp.eq.s32.totalorder %s35, 0
      %p162 = por %p160, %p161
      %s164 = sadd.s32 %s163, 1
      %p167 = scmp.eq.s32.totalorder %s29, 5
      %p168 = scmp.ne.s32.totalorder %s163, %s165
      %p169 = scmp.eq.s32.totalorder %s29, 0
      %p170 = por %p168, %p169
      %p171 = scmp.ne.s32.totalorder %s163, %s165
      %p172 = scmp.eq.s32.totalorder %s34, 5
      %p173 = por %p171, %p172
      %p174 = scmp.ne.s32.totalorder %s165, %s166
      %p175 = scmp.eq.s32.totalorder %s34, 0
      %p176 = por %p174, %p175
      %p177 = scmp.ne.s32.totalorder %s165, %s166
      %p178 = scmp.eq.s32.totalorder %s35, 5
      %p179 = por %p177, %p178
      %p181 = scmp.ne.s32.totalorder %s166, %s180
      %p182 = scmp.eq.s32.totalorder %s35, 0
      %p183 = por %p181, %p182
      %s185 = sadd.s32 %s184, 1
      %p188 = scmp.eq.s32.totalorder %s29, 5
      %p189 = scmp.ne.s32.totalorder %s184, %s186
      %p190 = scmp.eq.s32.totalorder %s29, 0
      %p191 = por %p189, %p190
      %p192 = scmp.ne.s32.totalorder %s184, %s186
      %p193 = scmp.eq.s32.totalorder %s34, 5
      %p194 = por %p192, %p193
      %p195 = scmp.ne.s32.totalorder %s186, %s187
      %p196 = scmp.eq.s32.totalorder %s34, 0
      %p197 = por %p195, %p196
      %p198 = scmp.ne.s32.totalorder %s186, %s187
      %p199 = scmp.eq.s32.totalorder %s35, 5
      %p200 = por %p198, %p199
      %p202 = scmp.ne.s32.totalorder %s187, %s201
      %p203 = scmp.eq.s32.totalorder %s35, 0
      %p204 = por %p202, %p203
      %s205 = ssub.s32 %s29, %s36
      %p206 = scmp.eq.s32.totalorder %s205, 0
      %s208 = sadd.s32 %s207, 1
      %s209 = scalar_select %p206, %s207, %s208
      %p212 = pneg %p206
      %p213 = scmp.eq.s32.totalorder %s29, 5
      %p214 = por %p212, %p213
      %p215 = scmp.ne.s32.totalorder %s207, %s210
      %p216 = scmp.eq.s32.totalorder %s29, 0
      %p217 = por %p215, %p216
      %p218 = scmp.ne.s32.totalorder %s207, %s210
      %p219 = scmp.eq.s32.totalorder %s34, 5
      %p220 = por %p218, %p219
      %p221 = scmp.ne.s32.totalorder %s210, %s211
      %p222 = scmp.eq.s32.totalorder %s34, 0
      %p223 = por %p221, %p222
      %p224 = scmp.ne.s32.totalorder %s210, %s211
      %p225 = scmp.eq.s32.totalorder %s35, 5
      %p226 = por %p224, %p225
      %p228 = scmp.ne.s32.totalorder %s211, %s227
      %p229 = scmp.eq.s32.totalorder %s35, 0
      %p230 = por %p228, %p229
      %s232 = sadd.s32 %s231, 1
      %p235 = scmp.eq.s32.totalorder %s29, 5
      %p236 = scmp.ne.s32.totalorder %s231, %s233
      %p237 = scmp.eq.s32.totalorder %s29, 0
      %p238 = por %p236, %p237
      %p239 = scmp.ne.s32.totalorder %s231, %s233
      %p240 = scmp.eq.s32.totalorder %s34, 5
      %p241 = por %p239, %p240
      %p242 = scmp.ne.s32.totalorder %s233, %s234
      %p243 = scmp.eq.s32.totalorder %s34, 0
      %p244 = por %p242, %p243
      %p245 = scmp.ne.s32.totalorder %s233, %s234
      %p246 = scmp.eq.s32.totalorder %s35, 5
      %p247 = por %p245, %p246
      %p249 = scmp.ne.s32.totalorder %s234, %s248
      %p250 = scmp.eq.s32.totalorder %s35, 0
      %p251 = por %p249, %p250
      %p252 = scmp.le.s32.totalorder 1, %s29
      %p253 = scmp.lt.s32.totalorder %s29, 7
      %p254 = pnand %p252, %p253
      %p255 = pneg %p254
      // Predicated region
      $region9: #{tpu_custom_call.1} parent=5 // pred_check
        _
      $region10: #{tpu_custom_call.1} parent=5 // pred_check_branch
        %257 = sbr.rel (%p254) target = $region12
      $region11: #{tpu_custom_call.1} parent=5 // pred_region
        %s258 = ssub.s32 %s29, 1
        // Predicated region
        $region13: #{tpu_custom_call.1} parent=11 // pred_check
          %p259 = pneg %p50
        $region14: #{tpu_custom_call.1} parent=11 // pred_check_branch
          %261 = sbr.rel (%p259) target = $region16
        $region15: #{tpu_custom_call.1} parent=11 // pred_region
          _
        $region16: #{tpu_custom_call.1} parent=11 // pred_fallthru
          _
        // Predicated region
        $region17: #{tpu_custom_call.1} parent=11 // pred_check
          %p262 = pneg %p71
        $region18: #{tpu_custom_call.1} parent=11 // pred_check_branch
          %264 = sbr.rel (%p262) target = $region20
        $region19: #{tpu_custom_call.1} parent=11 // pred_region
          _
        $region20: #{tpu_custom_call.1} parent=11 // pred_fallthru
          _
        // Predicated region
        $region21: #{tpu_custom_call.1} parent=11 // pred_check
          %p265 = pneg %p92
        $region22: #{tpu_custom_call.1} parent=11 // pred_check_branch
          %267 = sbr.rel (%p265) target = $region24
        $region23: #{tpu_custom_call.1} parent=11 // pred_region
          %s269 = ssub.s32 1536, 1536
          %270 = vsyncadd [#allocation5], %s269
          %s271 = sshll.u32 [#allocation4], 4
          %s272 = int_to_ptr.vmem [resolvable:$true] %s271
          %277 = dma.hbm_to_vmem [thread:$0]  %s3, 1536, %s272, [#allocation5], 192, 192, 12
        $region24: #{tpu_custom_call.1} parent=11 // pred_fallthru
          _
        // Predicated region
        $region25: #{tpu_custom_call.1} parent=11 // pred_check
          %p278 = pneg %p113
        $region26: #{tpu_custom_call.1} parent=11 // pred_check_branch
          %280 = sbr.rel (%p278) target = $region28
        $region27: #{tpu_custom_call.1} parent=11 // pred_region
          _
        $region28: #{tpu_custom_call.1} parent=11 // pred_fallthru
          _
        // Predicated region
        $region29: #{tpu_custom_call.1} parent=11 // pred_check
          %p281 = pneg %p134
        $region30: #{tpu_custom_call.1} parent=11 // pred_check_branch
          %283 = sbr.rel (%p281) target = $region32
        $region31: #{tpu_custom_call.1} parent=11 // pred_region
          _
        $region32: #{tpu_custom_call.1} parent=11 // pred_fallthru
          _
        // Predicated region
        $region33: #{tpu_custom_call.1} parent=11 // pred_check
          %p284 = pneg %p155
        $region34: #{tpu_custom_call.1} parent=11 // pred_check_branch
          %286 = sbr.rel (%p284) target = $region36
        $region35: #{tpu_custom_call.1} parent=11 // pred_region
          _
        $region36: #{tpu_custom_call.1} parent=11 // pred_fallthru
          _
        // Predicated region
        $region37: #{tpu_custom_call.1} parent=11 // pred_check
          %p287 = pneg %p176
        $region38: #{tpu_custom_call.1} parent=11 // pred_check_branch
          %289 = sbr.rel (%p287) target = $region40
        $region39: #{tpu_custom_call.1} parent=11 // pred_region
          %s291 = ssub.s32 2048, 2048
          %292 = vsyncadd [#allocation8], %s291
          %s293 = sshll.u32 [#allocation7], 4
          %s294 = int_to_ptr.vmem [resolvable:$true] %s293
          %299 = dma.hbm_to_vmem [thread:$0]  %s7, 2048, %s294, [#allocation8], 128, 128, 8
        $region40: #{tpu_custom_call.1} parent=11 // pred_fallthru
          _
        // Predicated region
        $region41: #{tpu_custom_call.1} parent=11 // pred_check
          %p300 = pneg %p197
        $region42: #{tpu_custom_call.1} parent=11 // pred_check_branch
          %302 = sbr.rel (%p300) target = $region44
        $region43: #{tpu_custom_call.1} parent=11 // pred_region
          _
        $region44: #{tpu_custom_call.1} parent=11 // pred_fallthru
          _
      $region12: #{tpu_custom_call.1} parent=5 // pred_fallthru
        _
      %p303 = scmp.lt.s32.totalorder %s29, 6
      // Predicated region
      $region45: #{tpu_custom_call.1} parent=5 // pred_check
        %p304 = pneg %p303
      $region46: #{tpu_custom_call.1} parent=5 // pred_check_branch
        %306 = sbr.rel (%p304) target = $region48
      $region47: #{tpu_custom_call.1} parent=5 // pred_region
        _
      $region48: #{tpu_custom_call.1} parent=5 // pred_fallthru
        _
      %p307 = scmp.le.s32.totalorder 1, %s29
      %p308 = scmp.lt.s32.totalorder %s29, 7
      %p309 = pnand %p307, %p308
      %p310 = pneg %p309
      // Predicated region
      $region49: #{tpu_custom_call.1} parent=5 // pred_check
        _
      $region50: #{tpu_custom_call.1} parent=5 // pred_check_branch
        %312 = sbr.rel (%p309) target = $region52
      $region51: #{tpu_custom_call.1} parent=5 // pred_region
        %s313 = ssub.s32 %s29, 1
        // Predicated region
        $region53: #{tpu_custom_call.1} parent=51 // pred_check
          %p314 = pneg %p92
        $region54: #{tpu_custom_call.1} parent=51 // pred_check_branch
          %316 = sbr.rel (%p314) target = $region56
        $region55: #{tpu_custom_call.1} parent=51 // pred_region
          %317 = dma.done [#allocation5], 1536
        $region56: #{tpu_custom_call.1} parent=51 // pred_fallthru
          _
        // Predicated region
        $region57: #{tpu_custom_call.1} parent=51 // pred_check
          %p318 = pneg %p176
        $region58: #{tpu_custom_call.1} parent=51 // pred_check_branch
          %320 = sbr.rel (%p318) target = $region60
        $region59: #{tpu_custom_call.1} parent=51 // pred_region
          %321 = dma.done [#allocation8], 2048
        $region60: #{tpu_custom_call.1} parent=51 // pred_fallthru
          _
        %p322 = pneg %p50
        %p323 = pneg %p47
        %p324 = pneg %p71
        %p325 = pneg %p68
        %p326 = pneg %p92
        %p327 = pneg %p89
        %p328 = pneg %p113
        %p329 = pneg %p110
        %p330 = pneg %p134
        %p331 = pneg %p131
        %p332 = pneg %p155
        %p333 = pneg %p152
        %p334 = pneg %p176
        %p335 = pneg %p173
        %p336 = pneg %p197
        %p337 = pneg %p194
        %p338 = pneg %p223
        %p339 = pneg %p220
        %s340 = sand.u32 %s210, 1
        %s341 = scalar_lea.sflag [#allocation6], %s340
        %s342 = sand.u32 %s210, 1
        %s343 = smul.addr %s342, 16
        %s344 = scalar_lea.vmem [#allocation9], %s343
        %p345 = pneg %p244
        %p346 = pneg %p241
        %p348 = scmp.eq.s32.totalorder %s34, 0
        // Predicated region
        $region61: #{tpu_custom_call.1} parent=51 // pred_check
          %p349 = pneg %p348
        $region62: #{tpu_custom_call.1} parent=51 // pred_check_branch
          %351 = sbr.rel (%p349) target = $region64
        $region63: #{tpu_custom_call.1} parent=51 // pred_region
          %v352 = vld [vmem:[%s1] sm:$0xff]
          %353 = vst [vmem:[#allocation10] sm:$0xff] %v352
        $region64: #{tpu_custom_call.1} parent=51 // pred_fallthru
          _
        %v354 = vlaneseq
        %v355 = vand.u32 %v354, 127
        %v356 = vadd.s32 %v355, 128
        %s357 = smul.u32 %s34, 8
        %s358 = sld [smem:[#allocation3 + %s357]]
        %v359 = vstv %s358
        %vm360 = vcmp.eq.s32.totalorder %v355, %v359
        %vm361 = vcmp.eq.s32.totalorder %v356, %v359
        %v362 = vsel %vm360, 1, 0
        %v363 = vsel %vm361, 1, 0
        %v364 = vcvt.s32.f32 %v362
        %v365 = vcvt.s32.f32 %v363
        %s366 = sadd.s32 %s357, 1
        %s367 = sld [smem:[#allocation3 + %s366]]
        %v368 = vstv %s367
        %vm369 = vcmp.eq.s32.totalorder %v355, %v368
        %vm370 = vcmp.eq.s32.totalorder %v356, %v368
        %v371 = vsel %vm369, 1, 0
        %v372 = vsel %vm370, 1, 0
        %v373 = vcvt.s32.f32 %v371
        %v374 = vcvt.s32.f32 %v372
        %s375 = sadd.s32 %s357, 2
        %s376 = sld [smem:[#allocation3 + %s375]]
        %v377 = vstv %s376
        %vm378 = vcmp.eq.s32.totalorder %v355, %v377
        %vm379 = vcmp.eq.s32.totalorder %v356, %v377
        %v380 = vsel %vm378, 1, 0
        %v381 = vsel %vm379, 1, 0
        %v382 = vcvt.s32.f32 %v380
        %v383 = vcvt.s32.f32 %v381
        %s384 = sadd.s32 %s357, 3
        %s385 = sld [smem:[#allocation3 + %s384]]
        %v386 = vstv %s385
        %vm387 = vcmp.eq.s32.totalorder %v355, %v386
        %vm388 = vcmp.eq.s32.totalorder %v356, %v386
        %v389 = vsel %vm387, 1, 0
        %v390 = vsel %vm388, 1, 0
        %v391 = vcvt.s32.f32 %v389
        %v392 = vcvt.s32.f32 %v390
        %s393 = sadd.s32 %s357, 4
        %s394 = sld [smem:[#allocation3 + %s393]]
        %v395 = vstv %s394
        %vm396 = vcmp.eq.s32.totalorder %v355, %v395
        %vm397 = vcmp.eq.s32.totalorder %v356, %v395
        %v398 = vsel %vm396, 1, 0
        %v399 = vsel %vm397, 1, 0
        %v400 = vcvt.s32.f32 %v398
        %v401 = vcvt.s32.f32 %v399
        %s402 = sadd.s32 %s357, 5
        %s403 = sld [smem:[#allocation3 + %s402]]
        %v404 = vstv %s403
        %vm405 = vcmp.eq.s32.totalorder %v355, %v404
        %vm406 = vcmp.eq.s32.totalorder %v356, %v404
        %v407 = vsel %vm405, 1, 0
        %v408 = vsel %vm406, 1, 0
        %v409 = vcvt.s32.f32 %v407
        %v410 = vcvt.s32.f32 %v408
        %s411 = sadd.s32 %s357, 6
        %s412 = sld [smem:[#allocation3 + %s411]]
        %v413 = vstv %s412
        %vm414 = vcmp.eq.s32.totalorder %v355, %v413
        %vm415 = vcmp.eq.s32.totalorder %v356, %v413
        %v416 = vsel %vm414, 1, 0
        %v417 = vsel %vm415, 1, 0
        %v418 = vcvt.s32.f32 %v416
        %v419 = vcvt.s32.f32 %v417
        %s420 = sadd.s32 %s357, 7
        %s421 = sld [smem:[#allocation3 + %s420]]
        %v422 = vstv %s421
        %vm423 = vcmp.eq.s32.totalorder %v355, %v422
        %vm424 = vcmp.eq.s32.totalorder %v356, %v422
        %v425 = vsel %vm423, 1, 0
        %v426 = vsel %vm424, 1, 0
        %v427 = vcvt.s32.f32 %v425
        %v428 = vcvt.s32.f32 %v426
        %vm429 = vcmask 1040384
        %v430 = vsel %vm429, %v364, %v373
        %v431 = vsel %vm429, %v365, %v374
        %vm432 = vcmask 1041408
        %v433 = vsel %vm432, %v430, %v382
        %v434 = vsel %vm432, %v431, %v383
        %vm435 = vcmask 1042432
        %v436 = vsel %vm435, %v433, %v391
        %v437 = vsel %vm435, %v434, %v392
        %vm438 = vcmask 1043456
        %v439 = vsel %vm438, %v436, %v400
        %v440 = vsel %vm438, %v437, %v401
        %vm441 = vcmask 1044480
        %v442 = vsel %vm441, %v439, %v409
        %v443 = vsel %vm441, %v440, %v410
        %vm444 = vcmask 1045504
        %v445 = vsel %vm444, %v442, %v418
        %v446 = vsel %vm444, %v443, %v419
        %vm447 = vcmask 1046528
        %v448 = vsel %vm447, %v445, %v427
        %v449 = vsel %vm447, %v446, %v428
        %v450 = vpack.c.bf16 %v448, %v448
        %v451 = vpack.c.bf16 %v449, %v449
        %v452 = vld [vmem:[%s2] sm:$0xf]
        %v453 = vld [vmem:[%s2 + $0x4] sm:$0xf]
        %v454 = vld [vmem:[%s2 + $0x8] sm:$0xf]
        %v455 = vld [vmem:[%s2 + $0xc] sm:$0xf]
        %v456 = vld [vmem:[%s2 + $0x10] sm:$0xf]
        %v457 = vld [vmem:[%s2 + $0x14] sm:$0xf]
        %v458 = vld [vmem:[%s2 + $0x18] sm:$0xf]
        %v459 = vld [vmem:[%s2 + $0x1c] sm:$0xf]
        %v460 = vld [vmem:[%s2 + $0x20] sm:$0xf]
        %v461 = vld [vmem:[%s2 + $0x24] sm:$0xf]
        %v462 = vld [vmem:[%s2 + $0x28] sm:$0xf]
        %v463 = vld [vmem:[%s2 + $0x2c] sm:$0xf]
        %v464 = vld [vmem:[%s2 + $0x30] sm:$0xf]
        %v465 = vld [vmem:[%s2 + $0x34] sm:$0xf]
        %v466 = vld [vmem:[%s2 + $0x38] sm:$0xf]
        %v467 = vld [vmem:[%s2 + $0x3c] sm:$0xf]
        %v468 = vld [vmem:[%s2 + $0x40] sm:$0xf]
        %v469 = vld [vmem:[%s2 + $0x44] sm:$0xf]
        %v470 = vld [vmem:[%s2 + $0x48] sm:$0xf]
        %v471 = vld [vmem:[%s2 + $0x4c] sm:$0xf]
        %v472 = vld [vmem:[%s2 + $0x50] sm:$0xf]
        %v473 = vld [vmem:[%s2 + $0x54] sm:$0xf]
        %v474 = vld [vmem:[%s2 + $0x58] sm:$0xf]
        %v475 = vld [vmem:[%s2 + $0x5c] sm:$0xf]
        %v476 = vld [vmem:[%s2 + $0x60] sm:$0xf]
        %v477 = vld [vmem:[%s2 + $0x64] sm:$0xf]
        %v478 = vld [vmem:[%s2 + $0x68] sm:$0xf]
        %v479 = vld [vmem:[%s2 + $0x6c] sm:$0xf]
        %v480 = vld [vmem:[%s2 + $0x70] sm:$0xf]
        %v481 = vld [vmem:[%s2 + $0x74] sm:$0xf]
        %v482 = vld [vmem:[%s2 + $0x78] sm:$0xf]
        %v483 = vld [vmem:[%s2 + $0x7c] sm:$0xf]
        %v516 = vunpack.c.l.b16 %v452
        %v517 = vunpack.c.l.b16 %v453
        %v518 = vunpack.c.l.b16 %v454
        %v519 = vunpack.c.l.b16 %v455
        %v520 = vunpack.c.l.b16 %v456
        %v521 = vunpack.c.l.b16 %v457
        %v522 = vunpack.c.l.b16 %v458
        %v523 = vunpack.c.l.b16 %v459
        %v524 = vunpack.c.l.b16 %v460
        %v525 = vunpack.c.l.b16 %v461
        %v526 = vunpack.c.l.b16 %v462
        %v527 = vunpack.c.l.b16 %v463
        %v528 = vunpack.c.l.b16 %v464
        %v529 = vunpack.c.l.b16 %v465
        %v530 = vunpack.c.l.b16 %v466
        %v531 = vunpack.c.l.b16 %v467
        %v532 = vunpack.c.l.b16 %v468
        %v533 = vunpack.c.l.b16 %v469
        %v534 = vunpack.c.l.b16 %v470
        %v535 = vunpack.c.l.b16 %v471
        %v536 = vunpack.c.l.b16 %v472
        %v537 = vunpack.c.l.b16 %v473
        %v538 = vunpack.c.l.b16 %v474
        %v539 = vunpack.c.l.b16 %v475
        %v540 = vunpack.c.l.b16 %v476
        %v541 = vunpack.c.l.b16 %v477
        %v542 = vunpack.c.l.b16 %v478
        %v543 = vunpack.c.l.b16 %v479
        %v544 = vunpack.c.l.b16 %v480
        %v545 = vunpack.c.l.b16 %v481
        %v546 = vunpack.c.l.b16 %v482
        %v547 = vunpack.c.l.b16 %v483
        %v548 = vpack.c.b16 %v517, %v516
        %v549 = vpack.c.b16 %v519, %v518
        %v550 = vpack.c.b16 %v521, %v520
        %v551 = vpack.c.b16 %v523, %v522
        %v552 = vpack.c.b16 %v525, %v524
        %v553 = vpack.c.b16 %v527, %v526
        %v554 = vpack.c.b16 %v529, %v528
        %v555 = vpack.c.b16 %v531, %v530
        %v556 = vpack.c.b16 %v533, %v532
        %v557 = vpack.c.b16 %v535, %v534
        %v558 = vpack.c.b16 %v537, %v536
        %v559 = vpack.c.b16 %v539, %v538
        %v560 = vpack.c.b16 %v541, %v540
        %v561 = vpack.c.b16 %v543, %v542
        %v562 = vpack.c.b16 %v545, %v544
        %v563 = vpack.c.b16 %v547, %v546
        %580 = vmatprep.subr.bf16.mxu0 0
        %581 = vmatpush1.bf16.msra.mxu0 %v548
        %582 = vmatprep.subr.bf16.mxu0 0
        %583 = vmatpush1.bf16.msra.mxu0 %v549
        %584 = vmatprep.subr.bf16.mxu0 0
        %585 = vmatpush1.bf16.msra.mxu0 %v550
        %586 = vmatprep.subr.bf16.mxu0 0
        %587 = vmatpush1.bf16.msra.mxu0 %v551
        %588 = vmatprep.subr.bf16.mxu0 0
        %589 = vmatpush1.bf16.msra.mxu0 %v552
        %590 = vmatprep.subr.bf16.mxu0 0
        %591 = vmatpush1.bf16.msra.mxu0 %v553
        %592 = vmatprep.subr.bf16.mxu0 0
        %593 = vmatpush1.bf16.msra.mxu0 %v554
        %594 = vmatprep.subr.bf16.mxu0 0
        %595 = vmatpush1.bf16.msra.mxu0 %v555
        %596 = vmatprep.subr.bf16.mxu0 0
        %597 = vmatpush1.bf16.msra.mxu0 %v556
        %598 = vmatprep.subr.bf16.mxu0 0
        %599 = vmatpush1.bf16.msra.mxu0 %v557
        %600 = vmatprep.subr.bf16.mxu0 0
        %601 = vmatpush1.bf16.msra.mxu0 %v558
        %602 = vmatprep.subr.bf16.mxu0 0
        %603 = vmatpush1.bf16.msra.mxu0 %v559
        %604 = vmatprep.subr.bf16.mxu0 0
        %605 = vmatpush1.bf16.msra.mxu0 %v560
        %606 = vmatprep.subr.bf16.mxu0 0
        %607 = vmatpush1.bf16.msra.mxu0 %v561
        %608 = vmatprep.subr.bf16.mxu0 0
        %609 = vmatpush1.bf16.msra.mxu0 %v562
        %610 = vmatprep.subr.bf16.mxu0 0
        %611 = vmatpush1.bf16.msra.mxu0 %v563
        %612 = vmatprep.mubr.bf16.mxu0 %v451
        %613 = vmatmul.mubr.bf16.gmra.mrb[0].mxu0 %v450
        %v614 = vpop.f32.mrb[0].mxu0
        %v615 = vadd.f32 0.0, %v614
        %v616 = vpop.f32.mrb[0].mxu0
        %v617 = vpop.f32.mrb[0].mxu0
        %v618 = vpop.f32.mrb[0].mxu0
        %619 = vdwg.mxu0
        %v620 = vmax.f32 %v615, 0.0
        %v621 = vpack.c.bf16 %v620, %v620
        %v622 = vld [vmem:[#allocation10] sm:$0xff]
        %v623 = vld [vmem:[#allocation4] sm:$0xff]
        %v624 = vld [vmem:[#allocation4 + $0x8] sm:$0xf]
        %v625 = vld [vmem:[#allocation4 + $0xc] sm:$0xff]
        %v626 = vld [vmem:[#allocation4 + $0x14] sm:$0xf]
        %v627 = vld [vmem:[#allocation4 + $0x18] sm:$0xff]
        %v628 = vld [vmem:[#allocation4 + $0x20] sm:$0xf]
        %v629 = vld [vmem:[#allocation4 + $0x24] sm:$0xff]
        %v630 = vld [vmem:[#allocation4 + $0x2c] sm:$0xf]
        %v631 = vld [vmem:[#allocation4 + $0x30] sm:$0xff]
        %v632 = vld [vmem:[#allocation4 + $0x38] sm:$0xf]
        %v633 = vld [vmem:[#allocation4 + $0x3c] sm:$0xff]
        %v634 = vld [vmem:[#allocation4 + $0x44] sm:$0xf]
        %v635 = vld [vmem:[#allocation4 + $0x48] sm:$0xff]
        %v636 = vld [vmem:[#allocation4 + $0x50] sm:$0xf]
        %v637 = vld [vmem:[#allocation4 + $0x54] sm:$0xff]
        %v638 = vld [vmem:[#allocation4 + $0x5c] sm:$0xf]
        %v639 = vld [vmem:[%s5] sm:$0x7]
        %v641 = vlaneseq
        %v642 = vshrl.u32 %v641, 7
        %v643 = vsub.s32 0, %v642
        %v644 = vrot.slane %v639, %v643
        %v645 = vlaneseq
        %v646 = vshrl.u32 %v645, 7
        %v647 = vsub.s32 1, %v646
        %v648 = vrot.slane %v639, %v647
        %v649 = vlaneseq
        %v650 = vshrl.u32 %v649, 7
        %v651 = vsub.s32 2, %v650
        %v652 = vrot.slane %v639, %v651
        %v672 = vunpack.c.l.b16 %v623
        %v673 = vunpack.c.h.b16 %v623
        %v674 = vunpack.c.l.b16 %v624
        %v675 = vunpack.c.l.b16 %v625
        %v676 = vunpack.c.h.b16 %v625
        %v677 = vunpack.c.l.b16 %v626
        %v678 = vunpack.c.l.b16 %v627
        %v679 = vunpack.c.h.b16 %v627
        %v680 = vunpack.c.l.b16 %v628
        %v681 = vunpack.c.l.b16 %v629
        %v682 = vunpack.c.h.b16 %v629
        %v683 = vunpack.c.l.b16 %v630
        %v684 = vunpack.c.l.b16 %v631
        %v685 = vunpack.c.h.b16 %v631
        %v686 = vunpack.c.l.b16 %v632
        %v687 = vunpack.c.l.b16 %v633
        %v688 = vunpack.c.h.b16 %v633
        %v689 = vunpack.c.l.b16 %v634
        %v690 = vunpack.c.l.b16 %v635
        %v691 = vunpack.c.h.b16 %v635
        %v692 = vunpack.c.l.b16 %v636
        %v693 = vunpack.c.l.b16 %v637
        %v694 = vunpack.c.h.b16 %v637
        %v695 = vunpack.c.l.b16 %v638
        %v696 = vpack.c.b16 %v675, %v672
        %v697 = vpack.c.b16 %v676, %v673
        %v698 = vpack.c.b16 %v677, %v674
        %v699 = vpack.c.b16 %v681, %v678
        %v700 = vpack.c.b16 %v682, %v679
        %v701 = vpack.c.b16 %v683, %v680
        %v702 = vpack.c.b16 %v687, %v684
        %v703 = vpack.c.b16 %v688, %v685
        %v704 = vpack.c.b16 %v689, %v686
        %v705 = vpack.c.b16 %v693, %v690
        %v706 = vpack.c.b16 %v694, %v691
        %v707 = vpack.c.b16 %v695, %v692
        %vm720 = vcmask 523264
        %v722 = vsel %vm720, %v621, 0
        %724 = vmatprep.subr.bf16.mxu0 %v697
        %725 = vmatpush1.bf16.msra.mxu0 %v696
        %726 = vmatprep.subr.bf16.mxu0 %v700
        %727 = vmatpush1.bf16.msra.mxu0 %v699
        %728 = vmatprep.subr.bf16.mxu0 %v703
        %729 = vmatpush1.bf16.msra.mxu0 %v702
        %730 = vmatprep.subr.bf16.mxu0 %v706
        %731 = vmatpush1.bf16.msra.mxu0 %v705
        %732 = vmatprep.subr.bf16.mxu0 0
        %733 = vmatpush1.bf16.msra.mxu0 0
        %734 = vmatprep.subr.bf16.mxu0 0
        %735 = vmatpush1.bf16.msra.mxu0 0
        %736 = vmatprep.subr.bf16.mxu0 0
        %737 = vmatpush1.bf16.msra.mxu0 0
        %738 = vmatprep.subr.bf16.mxu0 0
        %739 = vmatpush1.bf16.msra.mxu0 0
        %740 = vmatprep.subr.bf16.mxu0 0
        %741 = vmatpush1.bf16.msra.mxu0 0
        %742 = vmatprep.subr.bf16.mxu0 0
        %743 = vmatpush1.bf16.msra.mxu0 0
        %744 = vmatprep.subr.bf16.mxu0 0
        %745 = vmatpush1.bf16.msra.mxu0 0
        %746 = vmatprep.subr.bf16.mxu0 0
        %747 = vmatpush1.bf16.msra.mxu0 0
        %748 = vmatprep.subr.bf16.mxu0 0
        %749 = vmatpush1.bf16.msra.mxu0 0
        %750 = vmatprep.subr.bf16.mxu0 0
        %751 = vmatpush1.bf16.msra.mxu0 0
        %752 = vmatprep.subr.bf16.mxu0 0
        %753 = vmatpush1.bf16.msra.mxu0 0
        %754 = vmatprep.subr.bf16.mxu0 0
        %755 = vmatpush1.bf16.msra.mxu0 0
        %756 = vmatprep.mubr.bf16.mxu0 0
        %757 = vmatmul.mubr.bf16.gmra.mrb[0].mxu0 %v722
        %v758 = vpop.f32.mrb[0].mxu0
        %v759 = vadd.f32 %v644, %v758
        %v760 = vpop.f32.mrb[0].mxu0
        %v761 = vadd.f32 %v648, %v760
        %v762 = vpop.f32.mrb[0].mxu0
        %v763 = vpop.f32.mrb[0].mxu0
        %764 = vdwg.mxu0
        %765 = vmatprep.subr.bf16.mxu0 0
        %766 = vmatpush1.bf16.msra.mxu0 %v698
        %767 = vmatprep.subr.bf16.mxu0 0
        %768 = vmatpush1.bf16.msra.mxu0 %v701
        %769 = vmatprep.subr.bf16.mxu0 0
        %770 = vmatpush1.bf16.msra.mxu0 %v704
        %771 = vmatprep.subr.bf16.mxu0 0
        %772 = vmatpush1.bf16.msra.mxu0 %v707
        %773 = vmatprep.subr.bf16.mxu0 0
        %774 = vmatpush1.bf16.msra.mxu0 0
        %775 = vmatprep.subr.bf16.mxu0 0
        %776 = vmatpush1.bf16.msra.mxu0 0
        %777 = vmatprep.subr.bf16.mxu0 0
        %778 = vmatpush1.bf16.msra.mxu0 0
        %779 = vmatprep.subr.bf16.mxu0 0
        %780 = vmatpush1.bf16.msra.mxu0 0
        %781 = vmatprep.subr.bf16.mxu0 0
        %782 = vmatpush1.bf16.msra.mxu0 0
        %783 = vmatprep.subr.bf16.mxu0 0
        %784 = vmatpush1.bf16.msra.mxu0 0
        %785 = vmatprep.subr.bf16.mxu0 0
        %786 = vmatpush1.bf16.msra.mxu0 0
        %787 = vmatprep.subr.bf16.mxu0 0
        %788 = vmatpush1.bf16.msra.mxu0 0
        %789 = vmatprep.subr.bf16.mxu0 0
        %790 = vmatpush1.bf16.msra.mxu0 0
        %791 = vmatprep.subr.bf16.mxu0 0
        %792 = vmatpush1.bf16.msra.mxu0 0
        %793 = vmatprep.subr.bf16.mxu0 0
        %794 = vmatpush1.bf16.msra.mxu0 0
        %795 = vmatprep.subr.bf16.mxu0 0
        %796 = vmatpush1.bf16.msra.mxu0 0
        %797 = vmatprep.mubr.bf16.mxu0 0
        %798 = vmatmul.mubr.bf16.gmra.mrb[0].mxu0 %v722
        %v799 = vpop.f32.mrb[0].mxu0
        %v800 = vadd.f32 %v652, %v799
        %v801 = vpop.f32.mrb[0].mxu0
        %v802 = vpop.f32.mrb[0].mxu0
        %v803 = vpop.f32.mrb[0].mxu0
        %804 = vdwg.mxu0
        %v805 = vpack.c.bf16 %v622, %v622
        %v806 = vld [vmem:[%s4] sm:$0xff]
        %v807 = vld [vmem:[%s4 + $0x8] sm:$0xf]
        %v808 = vld [vmem:[%s4 + $0xc] sm:$0xff]
        %v809 = vld [vmem:[%s4 + $0x14] sm:$0xf]
        %v810 = vld [vmem:[%s4 + $0x18] sm:$0xff]
        %v811 = vld [vmem:[%s4 + $0x20] sm:$0xf]
        %v812 = vld [vmem:[%s4 + $0x24] sm:$0xff]
        %v813 = vld [vmem:[%s4 + $0x2c] sm:$0xf]
        %v814 = vld [vmem:[%s4 + $0x30] sm:$0xff]
        %v815 = vld [vmem:[%s4 + $0x38] sm:$0xf]
        %v816 = vld [vmem:[%s4 + $0x3c] sm:$0xff]
        %v817 = vld [vmem:[%s4 + $0x44] sm:$0xf]
        %v818 = vld [vmem:[%s4 + $0x48] sm:$0xff]
        %v819 = vld [vmem:[%s4 + $0x50] sm:$0xf]
        %v820 = vld [vmem:[%s4 + $0x54] sm:$0xff]
        %v821 = vld [vmem:[%s4 + $0x5c] sm:$0xf]
        %v822 = vld [vmem:[%s4 + $0x60] sm:$0xff]
        %v823 = vld [vmem:[%s4 + $0x68] sm:$0xf]
        %v824 = vld [vmem:[%s4 + $0x6c] sm:$0xff]
        %v825 = vld [vmem:[%s4 + $0x74] sm:$0xf]
        %v826 = vld [vmem:[%s4 + $0x78] sm:$0xff]
        %v827 = vld [vmem:[%s4 + $0x80] sm:$0xf]
        %v828 = vld [vmem:[%s4 + $0x84] sm:$0xff]
        %v829 = vld [vmem:[%s4 + $0x8c] sm:$0xf]
        %v830 = vld [vmem:[%s4 + $0x90] sm:$0xff]
        %v831 = vld [vmem:[%s4 + $0x98] sm:$0xf]
        %v832 = vld [vmem:[%s4 + $0x9c] sm:$0xff]
        %v833 = vld [vmem:[%s4 + $0xa4] sm:$0xf]
        %v834 = vld [vmem:[%s4 + $0xa8] sm:$0xff]
        %v835 = vld [vmem:[%s4 + $0xb0] sm:$0xf]
        %v836 = vld [vmem:[%s4 + $0xb4] sm:$0xff]
        %v837 = vld [vmem:[%s4 + $0xbc] sm:$0xf]
        %v838 = vld [vmem:[%s6] sm:$0x7]
        %v840 = vlaneseq
        %v841 = vshrl.u32 %v840, 7
        %v842 = vsub.s32 0, %v841
        %v843 = vrot.slane %v838, %v842
        %v844 = vlaneseq
        %v845 = vshrl.u32 %v844, 7
        %v846 = vsub.s32 1, %v845
        %v847 = vrot.slane %v838, %v846
        %v848 = vlaneseq
        %v849 = vshrl.u32 %v848, 7
        %v850 = vsub.s32 2, %v849
        %v851 = vrot.slane %v838, %v850
        %v887 = vunpack.c.l.b16 %v806
        %v888 = vunpack.c.h.b16 %v806
        %v889 = vunpack.c.l.b16 %v807
        %v890 = vunpack.c.l.b16 %v808
        %v891 = vunpack.c.h.b16 %v808
        %v892 = vunpack.c.l.b16 %v809
        %v893 = vunpack.c.l.b16 %v810
        %v894 = vunpack.c.h.b16 %v810
        %v895 = vunpack.c.l.b16 %v811
        %v896 = vunpack.c.l.b16 %v812
        %v897 = vunpack.c.h.b16 %v812
        %v898 = vunpack.c.l.b16 %v813
        %v899 = vunpack.c.l.b16 %v814
        %v900 = vunpack.c.h.b16 %v814
        %v901 = vunpack.c.l.b16 %v815
        %v902 = vunpack.c.l.b16 %v816
        %v903 = vunpack.c.h.b16 %v816
        %v904 = vunpack.c.l.b16 %v817
        %v905 = vunpack.c.l.b16 %v818
        %v906 = vunpack.c.h.b16 %v818
        %v907 = vunpack.c.l.b16 %v819
        %v908 = vunpack.c.l.b16 %v820
        %v909 = vunpack.c.h.b16 %v820
        %v910 = vunpack.c.l.b16 %v821
        %v911 = vunpack.c.l.b16 %v822
        %v912 = vunpack.c.h.b16 %v822
        %v913 = vunpack.c.l.b16 %v823
        %v914 = vunpack.c.l.b16 %v824
        %v915 = vunpack.c.h.b16 %v824
        %v916 = vunpack.c.l.b16 %v825
        %v917 = vunpack.c.l.b16 %v826
        %v918 = vunpack.c.h.b16 %v826
        %v919 = vunpack.c.l.b16 %v827
        %v920 = vunpack.c.l.b16 %v828
        %v921 = vunpack.c.h.b16 %v828
        %v922 = vunpack.c.l.b16 %v829
        %v923 = vunpack.c.l.b16 %v830
        %v924 = vunpack.c.h.b16 %v830
        %v925 = vunpack.c.l.b16 %v831
        %v926 = vunpack.c.l.b16 %v832
        %v927 = vunpack.c.h.b16 %v832
        %v928 = vunpack.c.l.b16 %v833
        %v929 = vunpack.c.l.b16 %v834
        %v930 = vunpack.c.h.b16 %v834
        %v931 = vunpack.c.l.b16 %v835
        %v932 = vunpack.c.l.b16 %v836
        %v933 = vunpack.c.h.b16 %v836
        %v934 = vunpack.c.l.b16 %v837
        %v935 = vpack.c.b16 %v890, %v887
        %v936 = vpack.c.b16 %v891, %v888
        %v937 = vpack.c.b16 %v892, %v889
        %v938 = vpack.c.b16 %v896, %v893
        %v939 = vpack.c.b16 %v897, %v894
        %v940 = vpack.c.b16 %v898, %v895
        %v941 = vpack.c.b16 %v902, %v899
        %v942 = vpack.c.b16 %v903, %v900
        %v943 = vpack.c.b16 %v904, %v901
        %v944 = vpack.c.b16 %v908, %v905
        %v945 = vpack.c.b16 %v909, %v906
        %v946 = vpack.c.b16 %v910, %v907
        %v947 = vpack.c.b16 %v914, %v911
        %v948 = vpack.c.b16 %v915, %v912
        %v949 = vpack.c.b16 %v916, %v913
        %v950 = vpack.c.b16 %v920, %v917
        %v951 = vpack.c.b16 %v921, %v918
        %v952 = vpack.c.b16 %v922, %v919
        %v953 = vpack.c.b16 %v926, %v923
        %v954 = vpack.c.b16 %v927, %v924
        %v955 = vpack.c.b16 %v928, %v925
        %v956 = vpack.c.b16 %v932, %v929
        %v957 = vpack.c.b16 %v933, %v930
        %v958 = vpack.c.b16 %v934, %v931
        %983 = vmatprep.subr.bf16.mxu0 %v936
        %984 = vmatpush1.bf16.msra.mxu0 %v935
        %985 = vmatprep.subr.bf16.mxu0 %v939
        %986 = vmatpush1.bf16.msra.mxu0 %v938
        %987 = vmatprep.subr.bf16.mxu0 %v942
        %988 = vmatpush1.bf16.msra.mxu0 %v941
        %989 = vmatprep.subr.bf16.mxu0 %v945
        %990 = vmatpush1.bf16.msra.mxu0 %v944
        %991 = vmatprep.subr.bf16.mxu0 %v948
        %992 = vmatpush1.bf16.msra.mxu0 %v947
        %993 = vmatprep.subr.bf16.mxu0 %v951
        %994 = vmatpush1.bf16.msra.mxu0 %v950
        %995 = vmatprep.subr.bf16.mxu0 %v954
        %996 = vmatpush1.bf16.msra.mxu0 %v953
        %997 = vmatprep.subr.bf16.mxu0 %v957
        %998 = vmatpush1.bf16.msra.mxu0 %v956
        %999 = vmatprep.subr.bf16.mxu0 0
        %1000 = vmatpush1.bf16.msra.mxu0 0
        %1001 = vmatprep.subr.bf16.mxu0 0
        %1002 = vmatpush1.bf16.msra.mxu0 0
        %1003 = vmatprep.subr.bf16.mxu0 0
        %1004 = vmatpush1.bf16.msra.mxu0 0
        %1005 = vmatprep.subr.bf16.mxu0 0
        %1006 = vmatpush1.bf16.msra.mxu0 0
        %1007 = vmatprep.subr.bf16.mxu0 0
        %1008 = vmatpush1.bf16.msra.mxu0 0
        %1009 = vmatprep.subr.bf16.mxu0 0
        %1010 = vmatpush1.bf16.msra.mxu0 0
        %1011 = vmatprep.subr.bf16.mxu0 0
        %1012 = vmatpush1.bf16.msra.mxu0 0
        %1013 = vmatprep.subr.bf16.mxu0 0
        %1014 = vmatpush1.bf16.msra.mxu0 0
        %1015 = vmatprep.mubr.bf16.mxu0 0
        %1016 = vmatmul.mubr.bf16.gmra.mrb[0].mxu0 %v805
        %v1017 = vpop.f32.mrb[0].mxu0
        %v1018 = vadd.f32 %v843, %v1017
        %v1019 = vpop.f32.mrb[0].mxu0
        %v1020 = vadd.f32 %v847, %v1019
        %v1021 = vpop.f32.mrb[0].mxu0
        %v1022 = vpop.f32.mrb[0].mxu0
        %1023 = vdwg.mxu0
        %1024 = vmatprep.subr.bf16.mxu0 0
        %1025 = vmatpush1.bf16.msra.mxu0 %v937
        %1026 = vmatprep.subr.bf16.mxu0 0
        %1027 = vmatpush1.bf16.msra.mxu0 %v940
        %1028 = vmatprep.subr.bf16.mxu0 0
        %1029 = vmatpush1.bf16.msra.mxu0 %v943
        %1030 = vmatprep.subr.bf16.mxu0 0
        %1031 = vmatpush1.bf16.msra.mxu0 %v946
        %1032 = vmatprep.subr.bf16.mxu0 0
        %1033 = vmatpush1.bf16.msra.mxu0 %v949
        %1034 = vmatprep.subr.bf16.mxu0 0
        %1035 = vmatpush1.bf16.msra.mxu0 %v952
        %1036 = vmatprep.subr.bf16.mxu0 0
        %1037 = vmatpush1.bf16.msra.mxu0 %v955
        %1038 = vmatprep.subr.bf16.mxu0 0
        %1039 = vmatpush1.bf16.msra.mxu0 %v958
        %1040 = vmatprep.subr.bf16.mxu0 0
        %1041 = vmatpush1.bf16.msra.mxu0 0
        %1042 = vmatprep.subr.bf16.mxu0 0
        %1043 = vmatpush1.bf16.msra.mxu0 0
        %1044 = vmatprep.subr.bf16.mxu0 0
        %1045 = vmatpush1.bf16.msra.mxu0 0
        %1046 = vmatprep.subr.bf16.mxu0 0
        %1047 = vmatpush1.bf16.msra.mxu0 0
        %1048 = vmatprep.subr.bf16.mxu0 0
        %1049 = vmatpush1.bf16.msra.mxu0 0
        %1050 = vmatprep.subr.bf16.mxu0 0
        %1051 = vmatpush1.bf16.msra.mxu0 0
        %1052 = vmatprep.subr.bf16.mxu0 0
        %1053 = vmatpush1.bf16.msra.mxu0 0
        %1054 = vmatprep.subr.bf16.mxu0 0
        %1055 = vmatpush1.bf16.msra.mxu0 0
        %1056 = vmatprep.mubr.bf16.mxu0 0
        %1057 = vmatmul.mubr.bf16.gmra.mrb[0].mxu0 %v805
        %v1058 = vpop.f32.mrb[0].mxu0
        %v1059 = vadd.f32 %v851, %v1058
        %v1060 = vpop.f32.mrb[0].mxu0
        %v1061 = vpop.f32.mrb[0].mxu0
        %v1062 = vpop.f32.mrb[0].mxu0
        %1063 = vdwg.mxu0
        %v1064 = vadd.f32 %v759, %v1018
        %v1065 = vxor.u32 %v1064, 2147483648
        %v1066 = vmul.f32 %v1065, 1.442695
        %v1067 = vpow.pop %v1066
        %v1068 = vadd.f32 %v1067, 1.0
        %v1069 = vrcp.pop %v1068
        %v1070 = vmul.f32 1.0, %v1069
        %v1071 = vadd.f32 %v761, %v1020
        %v1072 = vxor.u32 %v1071, 2147483648
        %v1073 = vmul.f32 %v1072, 1.442695
        %v1074 = vpow.pop %v1073
        %v1075 = vadd.f32 %v1074, 1.0
        %v1076 = vrcp.pop %v1075
        %v1077 = vmul.f32 1.0, %v1076
        %v1078 = vmul.f32 %v1070, %v1059
        %v1079 = vadd.f32 %v800, %v1078
        %v1080 = vtanh.pop %v1079
        %v1081 = vsub.f32 1.0, %v1077
        %v1082 = vmul.f32 %v1081, %v1080
        %v1083 = vmul.f32 %v1077, %v622
        %v1084 = vadd.f32 %v1082, %v1083
        %v1085 = vpack.c.bf16 %v1084, %v1084
        %v1086 = vld [vmem:[#allocation7] sm:$0xff]
        %v1087 = vld [vmem:[#allocation7 + $0x8] sm:$0xff]
        %v1088 = vld [vmem:[#allocation7 + $0x10] sm:$0xff]
        %v1089 = vld [vmem:[#allocation7 + $0x18] sm:$0xff]
        %v1090 = vld [vmem:[#allocation7 + $0x20] sm:$0xff]
        %v1091 = vld [vmem:[#allocation7 + $0x28] sm:$0xff]
        %v1092 = vld [vmem:[#allocation7 + $0x30] sm:$0xff]
        %v1093 = vld [vmem:[#allocation7 + $0x38] sm:$0xff]
        %v1094 = vld [vmem:[#allocation7 + $0x40] sm:$0xff]
        %v1095 = vld [vmem:[#allocation7 + $0x48] sm:$0xff]
        %v1096 = vld [vmem:[#allocation7 + $0x50] sm:$0xff]
        %v1097 = vld [vmem:[#allocation7 + $0x58] sm:$0xff]
        %v1098 = vld [vmem:[#allocation7 + $0x60] sm:$0xff]
        %v1099 = vld [vmem:[#allocation7 + $0x68] sm:$0xff]
        %v1100 = vld [vmem:[#allocation7 + $0x70] sm:$0xff]
        %v1101 = vld [vmem:[#allocation7 + $0x78] sm:$0xff]
        %v1102 = vld [vmem:[%s8] sm:$0x3]
        %v1104 = vlaneseq
        %v1105 = vshrl.u32 %v1104, 7
        %v1106 = vsub.s32 0, %v1105
        %v1107 = vrot.slane %v1102, %v1106
        %v1108 = vlaneseq
        %v1109 = vshrl.u32 %v1108, 7
        %v1110 = vsub.s32 1, %v1109
        %v1111 = vrot.slane %v1102, %v1110
        %v1130 = vunpack.c.l.b16 %v1086
        %v1131 = vunpack.c.h.b16 %v1086
        %v1132 = vunpack.c.l.b16 %v1087
        %v1133 = vunpack.c.h.b16 %v1087
        %v1134 = vunpack.c.l.b16 %v1088
        %v1135 = vunpack.c.h.b16 %v1088
        %v1136 = vunpack.c.l.b16 %v1089
        %v1137 = vunpack.c.h.b16 %v1089
        %v1138 = vunpack.c.l.b16 %v1090
        %v1139 = vunpack.c.h.b16 %v1090
        %v1140 = vunpack.c.l.b16 %v1091
        %v1141 = vunpack.c.h.b16 %v1091
        %v1142 = vunpack.c.l.b16 %v1092
        %v1143 = vunpack.c.h.b16 %v1092
        %v1144 = vunpack.c.l.b16 %v1093
        %v1145 = vunpack.c.h.b16 %v1093
        %v1146 = vunpack.c.l.b16 %v1094
        %v1147 = vunpack.c.h.b16 %v1094
        %v1148 = vunpack.c.l.b16 %v1095
        %v1149 = vunpack.c.h.b16 %v1095
        %v1150 = vunpack.c.l.b16 %v1096
        %v1151 = vunpack.c.h.b16 %v1096
        %v1152 = vunpack.c.l.b16 %v1097
        %v1153 = vunpack.c.h.b16 %v1097
        %v1154 = vunpack.c.l.b16 %v1098
        %v1155 = vunpack.c.h.b16 %v1098
        %v1156 = vunpack.c.l.b16 %v1099
        %v1157 = vunpack.c.h.b16 %v1099
        %v1158 = vunpack.c.l.b16 %v1100
        %v1159 = vunpack.c.h.b16 %v1100
        %v1160 = vunpack.c.l.b16 %v1101
        %v1161 = vunpack.c.h.b16 %v1101
        %v1162 = vpack.c.b16 %v1132, %v1130
        %v1163 = vpack.c.b16 %v1133, %v1131
        %v1164 = vpack.c.b16 %v1136, %v1134
        %v1165 = vpack.c.b16 %v1137, %v1135
        %v1166 = vpack.c.b16 %v1140, %v1138
        %v1167 = vpack.c.b16 %v1141, %v1139
        %v1168 = vpack.c.b16 %v1144, %v1142
        %v1169 = vpack.c.b16 %v1145, %v1143
        %v1170 = vpack.c.b16 %v1148, %v1146
        %v1171 = vpack.c.b16 %v1149, %v1147
        %v1172 = vpack.c.b16 %v1152, %v1150
        %v1173 = vpack.c.b16 %v1153, %v1151
        %v1174 = vpack.c.b16 %v1156, %v1154
        %v1175 = vpack.c.b16 %v1157, %v1155
        %v1176 = vpack.c.b16 %v1160, %v1158
        %v1177 = vpack.c.b16 %v1161, %v1159
        %1194 = vmatprep.subr.bf16.mxu0 %v1163
        %1195 = vmatpush1.bf16.msra.mxu0 %v1162
        %1196 = vmatprep.subr.bf16.mxu0 %v1165
        %1197 = vmatpush1.bf16.msra.mxu0 %v1164
        %1198 = vmatprep.subr.bf16.mxu0 %v1167
        %1199 = vmatpush1.bf16.msra.mxu0 %v1166
        %1200 = vmatprep.subr.bf16.mxu0 %v1169
        %1201 = vmatpush1.bf16.msra.mxu0 %v1168
        %1202 = vmatprep.subr.bf16.mxu0 %v1171
        %1203 = vmatpush1.bf16.msra.mxu0 %v1170
        %1204 = vmatprep.subr.bf16.mxu0 %v1173
        %1205 = vmatpush1.bf16.msra.mxu0 %v1172
        %1206 = vmatprep.subr.bf16.mxu0 %v1175
        %1207 = vmatpush1.bf16.msra.mxu0 %v1174
        %1208 = vmatprep.subr.bf16.mxu0 %v1177
        %1209 = vmatpush1.bf16.msra.mxu0 %v1176
        %1210 = vmatprep.subr.bf16.mxu0 0
        %1211 = vmatpush1.bf16.msra.mxu0 0
        %1212 = vmatprep.subr.bf16.mxu0 0
        %1213 = vmatpush1.bf16.msra.mxu0 0
        %1214 = vmatprep.subr.bf16.mxu0 0
        %1215 = vmatpush1.bf16.msra.mxu0 0
        %1216 = vmatprep.subr.bf16.mxu0 0
        %1217 = vmatpush1.bf16.msra.mxu0 0
        %1218 = vmatprep.subr.bf16.mxu0 0
        %1219 = vmatpush1.bf16.msra.mxu0 0
        %1220 = vmatprep.subr.bf16.mxu0 0
        %1221 = vmatpush1.bf16.msra.mxu0 0
        %1222 = vmatprep.subr.bf16.mxu0 0
        %1223 = vmatpush1.bf16.msra.mxu0 0
        %1224 = vmatprep.subr.bf16.mxu0 0
        %1225 = vmatpush1.bf16.msra.mxu0 0
        %1226 = vmatprep.mubr.bf16.mxu0 0
        %1227 = vmatmul.mubr.bf16.gmra.mrb[0].mxu0 %v1085
        %v1228 = vpop.f32.mrb[0].mxu0
        %v1229 = vadd.f32 %v1107, %v1228
        %v1230 = vpop.f32.mrb[0].mxu0
        %v1231 = vadd.f32 %v1111, %v1230
        %v1232 = vpop.f32.mrb[0].mxu0
        %v1233 = vpop.f32.mrb[0].mxu0
        %1234 = vdwg.mxu0
        %v1235 = vmax.f32 %v1229, %v1231
        %1236 = vmax.xlane.f32.xlu0 %v1235
        %v1237 = vpop.xlane.xlu0 %1236
        %v1238 = vsub.f32 %v1229, %v1237
        %v1239 = vsub.f32 %v1231, %v1237
        %v1240 = vmul.f32 %v1238, 1.442695
        %v1241 = vpow.pop %v1240
        %v1242 = vmul.f32 %v1239, 1.442695
        %v1243 = vpow.pop %v1242
        %v1244 = vadd.f32 %v1241, %v1243
        %1245 = vadd.xlane.f32.xlu0 %v1244
        %v1246 = vpop.xlane.xlu0 %1245
        %v1247 = vlog2.pop %v1246
        %v1248 = vmul.f32 %v1247, 0.6931472
        %v1249 = vsub.f32 %v1238, %v1248
        %v1250 = vsub.f32 %v1239, %v1248
        %1251 = vst [vmem:[%s344] sm:$0xff] %v1249
        %1252 = vst [vmem:[%s344 + $0x8] sm:$0xff] %v1250
        %1253 = vst [vmem:[#allocation10] sm:$0xff] %v1084
        %s1254 = sand.u32 %s210, 1
        %s1255 = scalar_lea.sflag [#allocation6], %s1254
        %s1256 = sand.u32 %s210, 1
        %s1257 = smul.addr %s1256, 16
        %s1258 = scalar_lea.vmem [#allocation9], %s1257
        // Predicated region
        $region65: #{tpu_custom_call.1} parent=51 // pred_check
          %p1259 = pneg %p220
        $region66: #{tpu_custom_call.1} parent=51 // pred_check_branch
          %1261 = sbr.rel (%p1259) target = $region68
        $region67: #{tpu_custom_call.1} parent=51 // pred_region
          %s1263 = ssub.s32 256, 256
          %1264 = vsyncadd %s1255, %s1263
          %s1265 = smul.addr %s34, 2
          %s1266 = smul.addr %s1265, 128
          %s1267 = scalar_lea.hbm %s9, %s1266
          %s1269 = sshll.u32 %s1258, 4
          %s1270 = int_to_ptr.vmem [resolvable:$true] %s1269
          %1272 = dma.vmem_to_hbm [thread:$0]  %s1270, 256, %s1267, %s1255
        $region68: #{tpu_custom_call.1} parent=51 // pred_fallthru
          _
        // Predicated region
        $region69: #{tpu_custom_call.1} parent=51 // pred_check
          %p1273 = pneg %p241
        $region70: #{tpu_custom_call.1} parent=51 // pred_check_branch
          %1275 = sbr.rel (%p1273) target = $region72
        $region71: #{tpu_custom_call.1} parent=51 // pred_region
          %s1277 = ssub.s32 128, 128
          %1278 = vsyncadd [#allocation11], %s1277
          %s1280 = sshll.u32 [#allocation10], 4
          %s1281 = int_to_ptr.vmem [resolvable:$true] %s1280
          %1283 = dma.vmem_to_hbm [thread:$0]  %s1281, 128, %s10, [#allocation11]
        $region72: #{tpu_custom_call.1} parent=51 // pred_fallthru
          _
        // Predicated region
        $region73: #{tpu_custom_call.1} parent=51 // pred_check
          %p1284 = pneg %p241
        $region74: #{tpu_custom_call.1} parent=51 // pred_check_branch
          %1286 = sbr.rel (%p1284) target = $region76
        $region75: #{tpu_custom_call.1} parent=51 // pred_region
          %1287 = dma.done [#allocation11], 128
        $region76: #{tpu_custom_call.1} parent=51 // pred_fallthru
          _
      $region52: #{tpu_custom_call.1} parent=5 // pred_fallthru
        _
      %p1288 = scmp.le.s32.totalorder 2, %s29
      // Predicated region
      $region77: #{tpu_custom_call.1} parent=5 // pred_check
        %p1289 = pneg %p1288
      $region78: #{tpu_custom_call.1} parent=5 // pred_check_branch
        %1291 = sbr.rel (%p1289) target = $region80
      $region79: #{tpu_custom_call.1} parent=5 // pred_region
        %s1292 = ssub.s32 %s29, 2
        // Predicated region
        $region81: #{tpu_custom_call.1} parent=79 // pred_check
          %p1293 = pneg %p226
        $region82: #{tpu_custom_call.1} parent=79 // pred_check_branch
          %1295 = sbr.rel (%p1293) target = $region84
        $region83: #{tpu_custom_call.1} parent=79 // pred_region
          %s1296 = sand.u32 %s211, 1
          %s1297 = scalar_lea.sflag [#allocation6], %s1296
          %s1298 = sand.u32 %s211, 1
          %s1299 = smul.addr %s1298, 16
          %s1300 = scalar_lea.vmem [#allocation9], %s1299
          %1301 = dma.done %s1297, 256
        $region84: #{tpu_custom_call.1} parent=79 // pred_fallthru
          _
      $region80: #{tpu_custom_call.1} parent=5 // pred_fallthru
        _
    $region6: #{tpu_custom_call.1} parent=1 // loop_footer
      %s33 = sadd.s32 1, %s29
    $region7: #{tpu_custom_call.1} parent=1 // loop_footer_branch
      %28 = sbr.rel target = $region3
    $region8: #{tpu_custom_call.1} parent=1 // loop_exit
      _
    %1302 = vsyncpa [#allocation5], 1
    %s1303 = scalar_lea.sflag [#allocation5], 1
    %1304 = vsyncpa %s1303, 1
    %1305 = vsyncpa [#allocation8], 1
    %1306 = vsyncpa [#allocation6], 1
    %s1307 = scalar_lea.sflag [#allocation6], 1
    %1308 = vsyncpa %s1307, 1
    %1309 = vsyncpa [#allocation11], 1

</llo_original>
